<compile_context>
chip_gen: v6e
topology: v6e:2x2x1
jax: 0.10.0
libtpu: 0.0.40
codegen_flags: <defaults>
</compile_context>

<pallas_src>
import functools
import math

import jax
import jax.numpy as jnp
from jax import lax
from jax.experimental import pallas as pl
from jax.experimental.pallas import tpu as pltpu

EPS = 1e-6  # annotated-transformer LayerNorm eps


def _layer_norm(x, a, b):
    """PyTorch-style: unbiased std (ddof=1), divide by (std + eps)."""
    d = x.shape[-1]
    mean = jnp.mean(x, axis=-1, keepdims=True)
    diff = x - mean
    var = jnp.sum(diff * diff, axis=-1, keepdims=True) / (d - 1)
    std = jnp.sqrt(var)
    return a * diff / (std + EPS) + b


# ------------------------------------------------------------------
# Kernel 1: one full encoder layer for a block of B_BLK sentences
# ------------------------------------------------------------------
def encoder_layer_kernel(n_heads,
                         x_ref, mask_ref,
                         a1_ref, b1_ref,
                         wqkv_ref, bqkv_ref,
                         wo_ref, bo_ref,
                         a2_ref, b2_ref,
                         w1_ref, bf1_ref, w2_ref, bf2_ref,
                         o_ref):
    Bb, T, D = x_ref.shape
    dk = D // n_heads
    scale = 1.0 / math.sqrt(dk)

    # Flattened activation slab: (Bb*T, D), f32.
    x = x_ref[...].astype(jnp.float32).reshape(Bb * T, D)

    # Additive attention bias from the key mask, computed once (f32).
    maskv = mask_ref[...]                                        # (Bb, 1, T) int32
    bias = jnp.where(maskv == 0, -1e9, 0.0).astype(jnp.float32)  # (Bb, 1, T)

    # ---- sublayer 0: x + self_attn(norm(x)) ----
    h1 = _layer_norm(x, a1_ref[...], b1_ref[...])
    qkv = jnp.dot(h1.astype(jnp.bfloat16), wqkv_ref[...],
                  preferred_element_type=jnp.float32) + bqkv_ref[...]   # (Bb*T, 3D)
    q = qkv[:, 0 * D:1 * D].astype(jnp.bfloat16)
    k = qkv[:, 1 * D:2 * D].astype(jnp.bfloat16)
    v = qkv[:, 2 * D:3 * D].astype(jnp.bfloat16)

    # Per-sentence, per-head TxT attention (scores/softmax in f32).
    ctx_rows = []
    for s in range(Bb):
        r0 = s * T
        bias_s = bias[s]                    # (1, T), broadcasts over query rows
        head_ctx = []
        for h in range(n_heads):
            lo = h * dk
            qh = q[r0:r0 + T, lo:lo + dk]   # (T, dk) bf16, static slices
            kh = k[r0:r0 + T, lo:lo + dk]
            vh = v[r0:r0 + T, lo:lo + dk]
            sc = lax.dot_general(qh, kh, (((1,), (1,)), ((), ())),
                                 preferred_element_type=jnp.float32) * scale
            sc = sc + bias_s                # (T, T) f32
            m = jnp.max(sc, axis=-1, keepdims=True)
            e = jnp.exp(sc - m)
            p = e * pl.reciprocal(jnp.sum(e, axis=-1, keepdims=True), approx=True)
            head_ctx.append(jnp.dot(p.astype(jnp.bfloat16), vh,
                                    preferred_element_type=jnp.float32))  # (T, dk)
        ctx_rows.append(jnp.concatenate(head_ctx, axis=-1))               # (T, D)
    ctx = jnp.concatenate(ctx_rows, axis=0)                               # (Bb*T, D)

    attn = jnp.dot(ctx.astype(jnp.bfloat16), wo_ref[...],
                   preferred_element_type=jnp.float32) + bo_ref[...]
    x = x + attn                            # residual (dropout = identity)

    # ---- sublayer 1: x + ffn(norm(x)) ----
    h2 = _layer_norm(x, a2_ref[...], b2_ref[...])
    f = jnp.dot(h2.astype(jnp.bfloat16), w1_ref[...],
                preferred_element_type=jnp.float32) + bf1_ref[...]
    f = jnp.maximum(f, 0.0)
    f = jnp.dot(f.astype(jnp.bfloat16), w2_ref[...],
                preferred_element_type=jnp.float32) + bf2_ref[...]
    x = x + f

    o_ref[...] = x.reshape(Bb, T, D).astype(o_ref.dtype)


# ------------------------------------------------------------------
# Kernel 2: final LayerNorm of token 0 only -> (B, D) sent_vec
# (the broadcast over tokens is done in plain XLA outside the kernel)
# ------------------------------------------------------------------
def final_sentvec_kernel(x0_ref, a_ref, b_ref, o_ref):
    x0 = x0_ref[...].astype(jnp.float32)            # (B, D)
    o_ref[...] = _layer_norm(x0, a_ref[...], b_ref[...]).astype(o_ref.dtype)


# ------------------------------------------------------------------
# Wrappers
# ------------------------------------------------------------------
def _vmem_limit_bytes(b_blk, T, D, Dff):
    # bf16 weights (double-buffered), f32 biases/norm params, f32 activation
    # blocks (in/out/mask, double-buffered) + headroom for f32 temporaries.
    w = 2 * (D * 3 * D + D * D + D * Dff + Dff * D) * 2
    b = 4 * (3 * D + 3 * D + Dff + D + 4 * D) * 2
    act = 4 * (2 * b_blk * T * D + b_blk * T) * 2
    tmp = 4 * b_blk * T * (3 * D + Dff + 4 * D)
    need = w + b + act + tmp
    return int(min(max(2 * need, 16 * 1024 * 1024), 48 * 1024 * 1024))


def run_encoder_layer(x, mask, p, n_heads, b_blk):
    B, T, D = x.shape
    assert B % b_blk == 0, "b_blk must divide the batch"
    Dff = p["w1"].shape[1]

    def full(shape):
        return pl.BlockSpec(shape, lambda b: (0,) * len(shape))

    in_specs = [
        pl.BlockSpec((b_blk, T, D), lambda b: (b, 0, 0)),    # x
        pl.BlockSpec((b_blk, 1, T), lambda b: (b, 0, 0)),    # mask
        full((1, D)), full((1, D)),                          # norm1 a, b
        full((D, 3 * D)), full((1, 3 * D)),                  # fused Wqkv, bqkv
        full((D, D)), full((1, D)),                          # Wo, bo
        full((1, D)), full((1, D)),                          # norm2 a, b
        full((D, Dff)), full((1, Dff)),                      # W1, b1
        full((Dff, D)), full((1, D)),                        # W2, b2
    ]
    return pl.pallas_call(
        functools.partial(encoder_layer_kernel, n_heads),
        out_shape=jax.ShapeDtypeStruct((B, T, D), x.dtype),
        grid=(B // b_blk,),
        in_specs=in_specs,
        out_specs=pl.BlockSpec((b_blk, T, D), lambda b: (b, 0, 0)),
        compiler_params=pltpu.CompilerParams(
            dimension_semantics=("parallel",),
            vmem_limit_bytes=_vmem_limit_bytes(b_blk, T, D, Dff)),
    )(x, mask,
      p["a1"], p["b1"],
      p["wqkv"], p["bqkv"], p["wo"], p["bo"],
      p["a2"], p["b2"],
      p["w1"], p["bf1"], p["w2"], p["bf2"])


def run_final_sentvec(x, a, b):
    B, T, D = x.shape
    x0 = x[:, 0, :]                      # only token 0 enters the kernel
    sent = pl.pallas_call(
        final_sentvec_kernel,
        out_shape=jax.ShapeDtypeStruct((B, D), x.dtype),
    )(x0, a, b)
    # sent_vec.repeat(n_tokens,1,1).permute(1,0,2) == broadcast over tokens.
    return jnp.broadcast_to(sent[:, None, :], (B, T, D))


def encoder_forward(x, mask, kernel_layer_params, final_a, final_b, n_heads,
                    b_blk):
    for p in kernel_layer_params:
        x = run_encoder_layer(x, mask, p, n_heads, b_blk)
    return run_final_sentvec(x, final_a, final_b)


# ------------------------------------------------------------------
# Pure-JAX f32 reference (mirrors the PyTorch forward)
# ------------------------------------------------------------------
def ref_encoder(x, mask, layer_params, final_a, final_b, n_heads):
    B, T, D = x.shape
    dk = D // n_heads
    for p in layer_params:
        h1 = _layer_norm(x, p["a1"], p["b1"])
        q = h1 @ p["wq"] + p["bq"]
        k = h1 @ p["wk"] + p["bk"]
        v = h1 @ p["wv"] + p["bv"]
        qh = q.reshape(B, T, n_heads, dk).transpose(0, 2, 1, 3)
        kh = k.reshape(B, T, n_heads, dk).transpose(0, 2, 1, 3)
        vh = v.reshape(B, T, n_heads, dk).transpose(0, 2, 1, 3)
        s = (qh @ kh.transpose(0, 1, 3, 2)) / math.sqrt(dk)       # (B,H,T,T)
        s = jnp.where(mask[:, None, :, :] == 0, -1e9, s)
        pa = jax.nn.softmax(s, axis=-1)
        ctx = (pa @ vh).transpose(0, 2, 1, 3).reshape(B, T, D)
        x = x + ctx @ p["wo"] + p["bo"]
        h2 = _layer_norm(x, p["a2"], p["b2"])
        x = x + jnp.maximum(h2 @ p["w1"] + p["bf1"], 0.0) @ p["w2"] + p["bf2"]
    x = _layer_norm(x, final_a, final_b)
    sent = x[:, 0, :]
    return jnp.broadcast_to(sent[:, None, :], (B, T, D))


# ------------------------------------------------------------------
def make_layer_params(key, D, Dff):
    ks = jax.random.split(key, 6)
    scale = 0.02
    return {
        "a1": jnp.ones((1, D), jnp.float32),
        "b1": jnp.zeros((1, D), jnp.float32),
        "wq": scale * jax.random.normal(ks[0], (D, D), jnp.float32),
        "bq": jnp.zeros((1, D), jnp.float32),
        "wk": scale * jax.random.normal(ks[1], (D, D), jnp.float32),
        "bk": jnp.zeros((1, D), jnp.float32),
        "wv": scale * jax.random.normal(ks[2], (D, D), jnp.float32),
        "bv": jnp.zeros((1, D), jnp.float32),
        "wo": scale * jax.random.normal(ks[3], (D, D), jnp.float32),
        "bo": jnp.zeros((1, D), jnp.float32),
        "a2": jnp.ones((1, D), jnp.float32),
        "b2": jnp.zeros((1, D), jnp.float32),
        "w1": scale * jax.random.normal(ks[4], (D, Dff), jnp.float32),
        "bf1": jnp.zeros((1, Dff), jnp.float32),
        "w2": scale * jax.random.normal(ks[5], (Dff, D), jnp.float32),
        "bf2": jnp.zeros((1, D), jnp.float32),
    }


def fuse_layer_params(p):
    """Kernel-side params: fused Wqkv/bqkv, weights stored as bf16."""
    return {
        "a1": p["a1"], "b1": p["b1"],
        "wqkv": jnp.concatenate([p["wq"], p["wk"], p["wv"]], axis=1)
                   .astype(jnp.bfloat16),
        "bqkv": jnp.concatenate([p["bq"], p["bk"], p["bv"]], axis=1),
        "wo": p["wo"].astype(jnp.bfloat16), "bo": p["bo"],
        "a2": p["a2"], "b2": p["b2"],
        "w1": p["w1"].astype(jnp.bfloat16), "bf1": p["bf1"],
        "w2": p["w2"].astype(jnp.bfloat16), "bf2": p["bf2"],
    }


if __name__ == "__main__":
    B, T, D, H, Dff, N = 4, 8, 32, 4, 64, 2
    B_BLK = 2   # sentences per grid step (grid = B // B_BLK = 2)

    key = jax.random.PRNGKey(0)
    kx, *klayers = jax.random.split(key, N + 1)

    x = jax.random.normal(kx, (B, T, D), jnp.float32)
    # x_mask: (n_sents, 1, n_tokens); mask out some trailing tokens
    mask = jnp.ones((B, 1, T), jnp.int32)
    mask = mask.at[1, 0, T - 2:].set(0)
    mask = mask.at[3, 0, T - 3:].set(0)

    layer_params = [make_layer_params(k, D, Dff) for k in klayers]
    final_a = jnp.ones((1, D), jnp.float32)
    final_b = jnp.zeros((1, D), jnp.float32)

    kernel_params = [fuse_layer_params(p) for p in layer_params]

    out = encoder_forward(x, mask, kernel_params, final_a, final_b, H,
                          b_blk=B_BLK)
    out = jax.block_until_ready(out)

    ref = ref_encoder(x, mask, layer_params, final_a, final_b, H)
    assert out.shape == (B, T, D)
    # bf16 matmul operands + approx reciprocal vs. full-f32 reference -> use a
    # bf16-appropriate tolerance (observed error is ~1e-3 at these shapes).
    err = float(jnp.max(jnp.abs(out - ref)))
    assert jnp.allclose(out, ref, atol=2e-2, rtol=2e-2), err

    print("KERNEL_OK")
</pallas_src>

<mosaic_0001>
module attributes {stable_mosaic.version = 11 : i64} {
  func.func @encoder_layer_kernel(%arg0: i32, %arg1: memref<2x8x32xf32, #tpu.memory_space<vmem>>, %arg2: memref<2x1x8xi32, #tpu.memory_space<vmem>>, %arg3: memref<1x32xf32, #tpu.memory_space<vmem>>, %arg4: memref<1x32xf32, #tpu.memory_space<vmem>>, %arg5: memref<32x96xbf16, #tpu.memory_space<vmem>>, %arg6: memref<1x96xf32, #tpu.memory_space<vmem>>, %arg7: memref<32x32xbf16, #tpu.memory_space<vmem>>, %arg8: memref<1x32xf32, #tpu.memory_space<vmem>>, %arg9: memref<1x32xf32, #tpu.memory_space<vmem>>, %arg10: memref<1x32xf32, #tpu.memory_space<vmem>>, %arg11: memref<32x64xbf16, #tpu.memory_space<vmem>>, %arg12: memref<1x64xf32, #tpu.memory_space<vmem>>, %arg13: memref<64x32xbf16, #tpu.memory_space<vmem>>, %arg14: memref<1x32xf32, #tpu.memory_space<vmem>>, %arg15: memref<2x8x32xf32, #tpu.memory_space<vmem>>) attributes {dimension_semantics = [#tpu.dimension_semantics<parallel>], iteration_bounds = array<i64: 2>, scalar_prefetch = 0 : i64, scratch_operands = 0 : i64, tpu.core_type = #tpu.core_type<tc>, window_params = [{transform_indices = @transform_0, window_bounds = array<i64: 2, 8, 32>}, {transform_indices = @transform_1, window_bounds = array<i64: 2, 1, 8>}, {pipeline_mode = #tpu.pipeline_mode<synchronous>, transform_indices = @transform_2, window_bounds = array<i64: 1, 32>}, {pipeline_mode = #tpu.pipeline_mode<synchronous>, transform_indices = @transform_3, window_bounds = array<i64: 1, 32>}, {pipeline_mode = #tpu.pipeline_mode<synchronous>, transform_indices = @transform_4, window_bounds = array<i64: 32, 96>}, {pipeline_mode = #tpu.pipeline_mode<synchronous>, transform_indices = @transform_5, window_bounds = array<i64: 1, 96>}, {pipeline_mode = #tpu.pipeline_mode<synchronous>, transform_indices = @transform_6, window_bounds = array<i64: 32, 32>}, {pipeline_mode = #tpu.pipeline_mode<synchronous>, transform_indices = @transform_7, window_bounds = array<i64: 1, 32>}, {pipeline_mode = #tpu.pipeline_mode<synchronous>, transform_indices = @transform_8, window_bounds = array<i64: 1, 32>}, {pipeline_mode = #tpu.pipeline_mode<synchronous>, transform_indices = @transform_9, window_bounds = array<i64: 1, 32>}, {pipeline_mode = #tpu.pipeline_mode<synchronous>, transform_indices = @transform_10, window_bounds = array<i64: 32, 64>}, {pipeline_mode = #tpu.pipeline_mode<synchronous>, transform_indices = @transform_11, window_bounds = array<i64: 1, 64>}, {pipeline_mode = #tpu.pipeline_mode<synchronous>, transform_indices = @transform_12, window_bounds = array<i64: 64, 32>}, {pipeline_mode = #tpu.pipeline_mode<synchronous>, transform_indices = @transform_13, window_bounds = array<i64: 1, 32>}, {transform_indices = @transform_14, window_bounds = array<i64: 2, 8, 32>}]} {
    %c0 = arith.constant 0 : index
    %c0_0 = arith.constant 0 : index
    %c0_1 = arith.constant 0 : index
    %0 = vector.load %arg1[%c0, %c0_0, %c0_1] : memref<2x8x32xf32, #tpu.memory_space<vmem>>, vector<2x8x32xf32>
    %1 = vector.shape_cast %0 : vector<2x8x32xf32> to vector<16x32xf32>
    %c0_2 = arith.constant 0 : index
    %c0_3 = arith.constant 0 : index
    %c0_4 = arith.constant 0 : index
    %2 = vector.load %arg2[%c0_2, %c0_3, %c0_4] : memref<2x1x8xi32, #tpu.memory_space<vmem>>, vector<2x1x8xi32>
    %c0_i32 = arith.constant 0 : i32
    %3 = vector.broadcast %c0_i32 : i32 to vector<2x1x8xi32>
    %4 = arith.cmpi eq, %2, %3 : vector<2x1x8xi32>
    %cst = arith.constant -1.000000e+09 : f32
    %cst_5 = arith.constant 0.000000e+00 : f32
    %5 = vector.broadcast %cst : f32 to vector<2x1x8xf32>
    %6 = vector.broadcast %cst_5 : f32 to vector<2x1x8xf32>
    %7 = arith.select %4, %5, %6 : vector<2x1x8xi1>, vector<2x1x8xf32>
    %c0_6 = arith.constant 0 : index
    %c0_7 = arith.constant 0 : index
    %8 = vector.load %arg3[%c0_6, %c0_7] : memref<1x32xf32, #tpu.memory_space<vmem>>, vector<1x32xf32>
    %c0_8 = arith.constant 0 : index
    %c0_9 = arith.constant 0 : index
    %9 = vector.load %arg4[%c0_8, %c0_9] : memref<1x32xf32, #tpu.memory_space<vmem>>, vector<1x32xf32>
    %cst_10 = arith.constant dense<0.000000e+00> : vector<16xf32>
    %10 = vector.multi_reduction <add>, %1, %cst_10 [1] : vector<16x32xf32> to vector<16xf32>
    %11 = vector.shape_cast %10 : vector<16xf32> to vector<16x1xf32>
    %cst_11 = arith.constant 3.200000e+01 : f32
    %12 = vector.broadcast %cst_11 : f32 to vector<16x1xf32>
    %13 = arith.divf %11, %12 : vector<16x1xf32>
    %14 = vector.broadcast %13 : vector<16x1xf32> to vector<16x32xf32>
    %15 = arith.subf %1, %14 : vector<16x32xf32>
    %16 = arith.mulf %15, %15 : vector<16x32xf32>
    %cst_12 = arith.constant dense<0.000000e+00> : vector<16xf32>
    %17 = vector.multi_reduction <add>, %16, %cst_12 [1] : vector<16x32xf32> to vector<16xf32>
    %18 = vector.shape_cast %17 : vector<16xf32> to vector<16x1xf32>
    %cst_13 = arith.constant 3.100000e+01 : f32
    %19 = vector.broadcast %cst_13 : f32 to vector<16x1xf32>
    %20 = arith.divf %18, %19 : vector<16x1xf32>
    %21 = math.sqrt %20 : vector<16x1xf32>
    %22 = vector.broadcast %8 : vector<1x32xf32> to vector<16x32xf32>
    %23 = arith.mulf %22, %15 : vector<16x32xf32>
    %cst_14 = arith.constant 9.99999997E-7 : f32
    %24 = vector.broadcast %cst_14 : f32 to vector<16x1xf32>
    %25 = arith.addf %21, %24 : vector<16x1xf32>
    %26 = vector.broadcast %25 : vector<16x1xf32> to vector<16x32xf32>
    %27 = arith.divf %23, %26 : vector<16x32xf32>
    %28 = vector.broadcast %9 : vector<1x32xf32> to vector<16x32xf32>
    %29 = arith.addf %27, %28 : vector<16x32xf32>
    %30 = arith.truncf %29 : vector<16x32xf32> to vector<16x32xbf16>
    %c0_15 = arith.constant 0 : index
    %c0_16 = arith.constant 0 : index
    %31 = vector.load %arg5[%c0_15, %c0_16] : memref<32x96xbf16, #tpu.memory_space<vmem>>, vector<32x96xbf16>
    %cst_17 = arith.constant dense<0.000000e+00> : vector<16x96xf32>
    %32 = tpu.matmul %30, %31, %cst_17 {dimension_numbers = #tpu.dot_dimension_numbers<[1], [0], [0], [1], [0, 0, 1, 1], [], []>} : vector<16x32xbf16>, vector<32x96xbf16>, vector<16x96xf32> -> vector<16x96xf32>
    %c0_18 = arith.constant 0 : index
    %c0_19 = arith.constant 0 : index
    %33 = vector.load %arg6[%c0_18, %c0_19] : memref<1x96xf32, #tpu.memory_space<vmem>>, vector<1x96xf32>
    %34 = vector.broadcast %33 : vector<1x96xf32> to vector<16x96xf32>
    %35 = arith.addf %32, %34 : vector<16x96xf32>
    %36 = vector.extract_strided_slice %35 {offsets = [0, 0], sizes = [16, 32], strides = [1, 1]} : vector<16x96xf32> to vector<16x32xf32>
    %37 = arith.truncf %36 : vector<16x32xf32> to vector<16x32xbf16>
    %38 = vector.extract_strided_slice %35 {offsets = [0, 32], sizes = [16, 32], strides = [1, 1]} : vector<16x96xf32> to vector<16x32xf32>
    %39 = arith.truncf %38 : vector<16x32xf32> to vector<16x32xbf16>
    %40 = vector.extract_strided_slice %35 {offsets = [0, 64], sizes = [16, 32], strides = [1, 1]} : vector<16x96xf32> to vector<16x32xf32>
    %41 = arith.truncf %40 : vector<16x32xf32> to vector<16x32xbf16>
    %42 = vector.extract_strided_slice %7 {offsets = [0, 0, 0], sizes = [1, 1, 8], strides = [1, 1, 1]} : vector<2x1x8xf32> to vector<1x1x8xf32>
    %43 = vector.shape_cast %42 : vector<1x1x8xf32> to vector<1x8xf32>
    %44 = vector.extract_strided_slice %37 {offsets = [0, 0], sizes = [8, 8], strides = [1, 1]} : vector<16x32xbf16> to vector<8x8xbf16>
    %45 = vector.extract_strided_slice %39 {offsets = [0, 0], sizes = [8, 8], strides = [1, 1]} : vector<16x32xbf16> to vector<8x8xbf16>
    %46 = vector.extract_strided_slice %41 {offsets = [0, 0], sizes = [8, 8], strides = [1, 1]} : vector<16x32xbf16> to vector<8x8xbf16>
    %cst_20 = arith.constant dense<0.000000e+00> : vector<8x8xf32>
    %47 = tpu.matmul %44, %45, %cst_20 {dimension_numbers = #tpu.dot_dimension_numbers<[1], [1], [0], [0], [0, 0, 1, 0], [], []>} : vector<8x8xbf16>, vector<8x8xbf16>, vector<8x8xf32> -> vector<8x8xf32>
    %cst_21 = arith.constant 0.353553385 : f32
    %48 = vector.broadcast %cst_21 : f32 to vector<8x8xf32>
    %49 = arith.mulf %47, %48 : vector<8x8xf32>
    %50 = vector.broadcast %43 : vector<1x8xf32> to vector<8x8xf32>
    %51 = arith.addf %49, %50 : vector<8x8xf32>
    %cst_22 = arith.constant dense<0xFF800000> : vector<8xf32>
    %52 = vector.multi_reduction <maximumf>, %51, %cst_22 [1] : vector<8x8xf32> to vector<8xf32>
    %53 = vector.shape_cast %52 : vector<8xf32> to vector<8x1xf32>
    %54 = vector.broadcast %53 : vector<8x1xf32> to vector<8x8xf32>
    %55 = arith.subf %51, %54 : vector<8x8xf32>
    %56 = math.exp %55 : vector<8x8xf32>
    %cst_23 = arith.constant dense<0.000000e+00> : vector<8xf32>
    %57 = vector.multi_reduction <add>, %56, %cst_23 [1] : vector<8x8xf32> to vector<8xf32>
    %58 = vector.shape_cast %57 : vector<8xf32> to vector<8x1xf32>
    %59 = tpu.reciprocal %58 {approx = true} : vector<8x1xf32> -> vector<8x1xf32>
    %60 = vector.broadcast %59 : vector<8x1xf32> to vector<8x8xf32>
    %61 = arith.mulf %56, %60 : vector<8x8xf32>
    %62 = arith.truncf %61 : vector<8x8xf32> to vector<8x8xbf16>
    %cst_24 = arith.constant dense<0.000000e+00> : vector<8x8xf32>
    %63 = tpu.matmul %62, %46, %cst_24 {dimension_numbers = #tpu.dot_dimension_numbers<[1], [0], [0], [1], [0, 0, 1, 1], [], []>} : vector<8x8xbf16>, vector<8x8xbf16>, vector<8x8xf32> -> vector<8x8xf32>
    %64 = vector.extract_strided_slice %37 {offsets = [0, 8], sizes = [8, 8], strides = [1, 1]} : vector<16x32xbf16> to vector<8x8xbf16>
    %65 = vector.extract_strided_slice %39 {offsets = [0, 8], sizes = [8, 8], strides = [1, 1]} : vector<16x32xbf16> to vector<8x8xbf16>
    %66 = vector.extract_strided_slice %41 {offsets = [0, 8], sizes = [8, 8], strides = [1, 1]} : vector<16x32xbf16> to vector<8x8xbf16>
    %cst_25 = arith.constant dense<0.000000e+00> : vector<8x8xf32>
    %67 = tpu.matmul %64, %65, %cst_25 {dimension_numbers = #tpu.dot_dimension_numbers<[1], [1], [0], [0], [0, 0, 1, 0], [], []>} : vector<8x8xbf16>, vector<8x8xbf16>, vector<8x8xf32> -> vector<8x8xf32>
    %cst_26 = arith.constant 0.353553385 : f32
    %68 = vector.broadcast %cst_26 : f32 to vector<8x8xf32>
    %69 = arith.mulf %67, %68 : vector<8x8xf32>
    %70 = vector.broadcast %43 : vector<1x8xf32> to vector<8x8xf32>
    %71 = arith.addf %69, %70 : vector<8x8xf32>
    %cst_27 = arith.constant dense<0xFF800000> : vector<8xf32>
    %72 = vector.multi_reduction <maximumf>, %71, %cst_27 [1] : vector<8x8xf32> to vector<8xf32>
    %73 = vector.shape_cast %72 : vector<8xf32> to vector<8x1xf32>
    %74 = vector.broadcast %73 : vector<8x1xf32> to vector<8x8xf32>
    %75 = arith.subf %71, %74 : vector<8x8xf32>
    %76 = math.exp %75 : vector<8x8xf32>
    %cst_28 = arith.constant dense<0.000000e+00> : vector<8xf32>
    %77 = vector.multi_reduction <add>, %76, %cst_28 [1] : vector<8x8xf32> to vector<8xf32>
    %78 = vector.shape_cast %77 : vector<8xf32> to vector<8x1xf32>
    %79 = tpu.reciprocal %78 {approx = true} : vector<8x1xf32> -> vector<8x1xf32>
    %80 = vector.broadcast %79 : vector<8x1xf32> to vector<8x8xf32>
    %81 = arith.mulf %76, %80 : vector<8x8xf32>
    %82 = arith.truncf %81 : vector<8x8xf32> to vector<8x8xbf16>
    %cst_29 = arith.constant dense<0.000000e+00> : vector<8x8xf32>
    %83 = tpu.matmul %82, %66, %cst_29 {dimension_numbers = #tpu.dot_dimension_numbers<[1], [0], [0], [1], [0, 0, 1, 1], [], []>} : vector<8x8xbf16>, vector<8x8xbf16>, vector<8x8xf32> -> vector<8x8xf32>
    %84 = vector.extract_strided_slice %37 {offsets = [0, 16], sizes = [8, 8], strides = [1, 1]} : vector<16x32xbf16> to vector<8x8xbf16>
    %85 = vector.extract_strided_slice %39 {offsets = [0, 16], sizes = [8, 8], strides = [1, 1]} : vector<16x32xbf16> to vector<8x8xbf16>
    %86 = vector.extract_strided_slice %41 {offsets = [0, 16], sizes = [8, 8], strides = [1, 1]} : vector<16x32xbf16> to vector<8x8xbf16>
    %cst_30 = arith.constant dense<0.000000e+00> : vector<8x8xf32>
    %87 = tpu.matmul %84, %85, %cst_30 {dimension_numbers = #tpu.dot_dimension_numbers<[1], [1], [0], [0], [0, 0, 1, 0], [], []>} : vector<8x8xbf16>, vector<8x8xbf16>, vector<8x8xf32> -> vector<8x8xf32>
    %cst_31 = arith.constant 0.353553385 : f32
    %88 = vector.broadcast %cst_31 : f32 to vector<8x8xf32>
    %89 = arith.mulf %87, %88 : vector<8x8xf32>
    %90 = vector.broadcast %43 : vector<1x8xf32> to vector<8x8xf32>
    %91 = arith.addf %89, %90 : vector<8x8xf32>
    %cst_32 = arith.constant dense<0xFF800000> : vector<8xf32>
    %92 = vector.multi_reduction <maximumf>, %91, %cst_32 [1] : vector<8x8xf32> to vector<8xf32>
    %93 = vector.shape_cast %92 : vector<8xf32> to vector<8x1xf32>
    %94 = vector.broadcast %93 : vector<8x1xf32> to vector<8x8xf32>
    %95 = arith.subf %91, %94 : vector<8x8xf32>
    %96 = math.exp %95 : vector<8x8xf32>
    %cst_33 = arith.constant dense<0.000000e+00> : vector<8xf32>
    %97 = vector.multi_reduction <add>, %96, %cst_33 [1] : vector<8x8xf32> to vector<8xf32>
    %98 = vector.shape_cast %97 : vector<8xf32> to vector<8x1xf32>
    %99 = tpu.reciprocal %98 {approx = true} : vector<8x1xf32> -> vector<8x1xf32>
    %100 = vector.broadcast %99 : vector<8x1xf32> to vector<8x8xf32>
    %101 = arith.mulf %96, %100 : vector<8x8xf32>
    %102 = arith.truncf %101 : vector<8x8xf32> to vector<8x8xbf16>
    %cst_34 = arith.constant dense<0.000000e+00> : vector<8x8xf32>
    %103 = tpu.matmul %102, %86, %cst_34 {dimension_numbers = #tpu.dot_dimension_numbers<[1], [0], [0], [1], [0, 0, 1, 1], [], []>} : vector<8x8xbf16>, vector<8x8xbf16>, vector<8x8xf32> -> vector<8x8xf32>
    %104 = vector.extract_strided_slice %37 {offsets = [0, 24], sizes = [8, 8], strides = [1, 1]} : vector<16x32xbf16> to vector<8x8xbf16>
    %105 = vector.extract_strided_slice %39 {offsets = [0, 24], sizes = [8, 8], strides = [1, 1]} : vector<16x32xbf16> to vector<8x8xbf16>
    %106 = vector.extract_strided_slice %41 {offsets = [0, 24], sizes = [8, 8], strides = [1, 1]} : vector<16x32xbf16> to vector<8x8xbf16>
    %cst_35 = arith.constant dense<0.000000e+00> : vector<8x8xf32>
    %107 = tpu.matmul %104, %105, %cst_35 {dimension_numbers = #tpu.dot_dimension_numbers<[1], [1], [0], [0], [0, 0, 1, 0], [], []>} : vector<8x8xbf16>, vector<8x8xbf16>, vector<8x8xf32> -> vector<8x8xf32>
    %cst_36 = arith.constant 0.353553385 : f32
    %108 = vector.broadcast %cst_36 : f32 to vector<8x8xf32>
    %109 = arith.mulf %107, %108 : vector<8x8xf32>
    %110 = vector.broadcast %43 : vector<1x8xf32> to vector<8x8xf32>
    %111 = arith.addf %109, %110 : vector<8x8xf32>
    %cst_37 = arith.constant dense<0xFF800000> : vector<8xf32>
    %112 = vector.multi_reduction <maximumf>, %111, %cst_37 [1] : vector<8x8xf32> to vector<8xf32>
    %113 = vector.shape_cast %112 : vector<8xf32> to vector<8x1xf32>
    %114 = vector.broadcast %113 : vector<8x1xf32> to vector<8x8xf32>
    %115 = arith.subf %111, %114 : vector<8x8xf32>
    %116 = math.exp %115 : vector<8x8xf32>
    %cst_38 = arith.constant dense<0.000000e+00> : vector<8xf32>
    %117 = vector.multi_reduction <add>, %116, %cst_38 [1] : vector<8x8xf32> to vector<8xf32>
    %118 = vector.shape_cast %117 : vector<8xf32> to vector<8x1xf32>
    %119 = tpu.reciprocal %118 {approx = true} : vector<8x1xf32> -> vector<8x1xf32>
    %120 = vector.broadcast %119 : vector<8x1xf32> to vector<8x8xf32>
    %121 = arith.mulf %116, %120 : vector<8x8xf32>
    %122 = arith.truncf %121 : vector<8x8xf32> to vector<8x8xbf16>
    %cst_39 = arith.constant dense<0.000000e+00> : vector<8x8xf32>
    %123 = tpu.matmul %122, %106, %cst_39 {dimension_numbers = #tpu.dot_dimension_numbers<[1], [0], [0], [1], [0, 0, 1, 1], [], []>} : vector<8x8xbf16>, vector<8x8xbf16>, vector<8x8xf32> -> vector<8x8xf32>
    %124 = tpu.concatenate %63, %83, %103, %123 in 1 : vector<8x8xf32>, vector<8x8xf32>, vector<8x8xf32>, vector<8x8xf32> -> vector<8x32xf32>
    %125 = vector.extract_strided_slice %7 {offsets = [1, 0, 0], sizes = [1, 1, 8], strides = [1, 1, 1]} : vector<2x1x8xf32> to vector<1x1x8xf32>
    %126 = vector.shape_cast %125 : vector<1x1x8xf32> to vector<1x8xf32>
    %127 = vector.extract_strided_slice %37 {offsets = [8, 0], sizes = [8, 8], strides = [1, 1]} : vector<16x32xbf16> to vector<8x8xbf16>
    %128 = vector.extract_strided_slice %39 {offsets = [8, 0], sizes = [8, 8], strides = [1, 1]} : vector<16x32xbf16> to vector<8x8xbf16>
    %129 = vector.extract_strided_slice %41 {offsets = [8, 0], sizes = [8, 8], strides = [1, 1]} : vector<16x32xbf16> to vector<8x8xbf16>
    %cst_40 = arith.constant dense<0.000000e+00> : vector<8x8xf32>
    %130 = tpu.matmul %127, %128, %cst_40 {dimension_numbers = #tpu.dot_dimension_numbers<[1], [1], [0], [0], [0, 0, 1, 0], [], []>} : vector<8x8xbf16>, vector<8x8xbf16>, vector<8x8xf32> -> vector<8x8xf32>
    %cst_41 = arith.constant 0.353553385 : f32
    %131 = vector.broadcast %cst_41 : f32 to vector<8x8xf32>
    %132 = arith.mulf %130, %131 : vector<8x8xf32>
    %133 = vector.broadcast %126 : vector<1x8xf32> to vector<8x8xf32>
    %134 = arith.addf %132, %133 : vector<8x8xf32>
    %cst_42 = arith.constant dense<0xFF800000> : vector<8xf32>
    %135 = vector.multi_reduction <maximumf>, %134, %cst_42 [1] : vector<8x8xf32> to vector<8xf32>
    %136 = vector.shape_cast %135 : vector<8xf32> to vector<8x1xf32>
    %137 = vector.broadcast %136 : vector<8x1xf32> to vector<8x8xf32>
    %138 = arith.subf %134, %137 : vector<8x8xf32>
    %139 = math.exp %138 : vector<8x8xf32>
    %cst_43 = arith.constant dense<0.000000e+00> : vector<8xf32>
    %140 = vector.multi_reduction <add>, %139, %cst_43 [1] : vector<8x8xf32> to vector<8xf32>
    %141 = vector.shape_cast %140 : vector<8xf32> to vector<8x1xf32>
    %142 = tpu.reciprocal %141 {approx = true} : vector<8x1xf32> -> vector<8x1xf32>
    %143 = vector.broadcast %142 : vector<8x1xf32> to vector<8x8xf32>
    %144 = arith.mulf %139, %143 : vector<8x8xf32>
    %145 = arith.truncf %144 : vector<8x8xf32> to vector<8x8xbf16>
    %cst_44 = arith.constant dense<0.000000e+00> : vector<8x8xf32>
    %146 = tpu.matmul %145, %129, %cst_44 {dimension_numbers = #tpu.dot_dimension_numbers<[1], [0], [0], [1], [0, 0, 1, 1], [], []>} : vector<8x8xbf16>, vector<8x8xbf16>, vector<8x8xf32> -> vector<8x8xf32>
    %147 = vector.extract_strided_slice %37 {offsets = [8, 8], sizes = [8, 8], strides = [1, 1]} : vector<16x32xbf16> to vector<8x8xbf16>
    %148 = vector.extract_strided_slice %39 {offsets = [8, 8], sizes = [8, 8], strides = [1, 1]} : vector<16x32xbf16> to vector<8x8xbf16>
    %149 = vector.extract_strided_slice %41 {offsets = [8, 8], sizes = [8, 8], strides = [1, 1]} : vector<16x32xbf16> to vector<8x8xbf16>
    %cst_45 = arith.constant dense<0.000000e+00> : vector<8x8xf32>
    %150 = tpu.matmul %147, %148, %cst_45 {dimension_numbers = #tpu.dot_dimension_numbers<[1], [1], [0], [0], [0, 0, 1, 0], [], []>} : vector<8x8xbf16>, vector<8x8xbf16>, vector<8x8xf32> -> vector<8x8xf32>
    %cst_46 = arith.constant 0.353553385 : f32
    %151 = vector.broadcast %cst_46 : f32 to vector<8x8xf32>
    %152 = arith.mulf %150, %151 : vector<8x8xf32>
    %153 = vector.broadcast %126 : vector<1x8xf32> to vector<8x8xf32>
    %154 = arith.addf %152, %153 : vector<8x8xf32>
    %cst_47 = arith.constant dense<0xFF800000> : vector<8xf32>
    %155 = vector.multi_reduction <maximumf>, %154, %cst_47 [1] : vector<8x8xf32> to vector<8xf32>
    %156 = vector.shape_cast %155 : vector<8xf32> to vector<8x1xf32>
    %157 = vector.broadcast %156 : vector<8x1xf32> to vector<8x8xf32>
    %158 = arith.subf %154, %157 : vector<8x8xf32>
    %159 = math.exp %158 : vector<8x8xf32>
    %cst_48 = arith.constant dense<0.000000e+00> : vector<8xf32>
    %160 = vector.multi_reduction <add>, %159, %cst_48 [1] : vector<8x8xf32> to vector<8xf32>
    %161 = vector.shape_cast %160 : vector<8xf32> to vector<8x1xf32>
    %162 = tpu.reciprocal %161 {approx = true} : vector<8x1xf32> -> vector<8x1xf32>
    %163 = vector.broadcast %162 : vector<8x1xf32> to vector<8x8xf32>
    %164 = arith.mulf %159, %163 : vector<8x8xf32>
    %165 = arith.truncf %164 : vector<8x8xf32> to vector<8x8xbf16>
    %cst_49 = arith.constant dense<0.000000e+00> : vector<8x8xf32>
    %166 = tpu.matmul %165, %149, %cst_49 {dimension_numbers = #tpu.dot_dimension_numbers<[1], [0], [0], [1], [0, 0, 1, 1], [], []>} : vector<8x8xbf16>, vector<8x8xbf16>, vector<8x8xf32> -> vector<8x8xf32>
    %167 = vector.extract_strided_slice %37 {offsets = [8, 16], sizes = [8, 8], strides = [1, 1]} : vector<16x32xbf16> to vector<8x8xbf16>
    %168 = vector.extract_strided_slice %39 {offsets = [8, 16], sizes = [8, 8], strides = [1, 1]} : vector<16x32xbf16> to vector<8x8xbf16>
    %169 = vector.extract_strided_slice %41 {offsets = [8, 16], sizes = [8, 8], strides = [1, 1]} : vector<16x32xbf16> to vector<8x8xbf16>
    %cst_50 = arith.constant dense<0.000000e+00> : vector<8x8xf32>
    %170 = tpu.matmul %167, %168, %cst_50 {dimension_numbers = #tpu.dot_dimension_numbers<[1], [1], [0], [0], [0, 0, 1, 0], [], []>} : vector<8x8xbf16>, vector<8x8xbf16>, vector<8x8xf32> -> vector<8x8xf32>
    %cst_51 = arith.constant 0.353553385 : f32
    %171 = vector.broadcast %cst_51 : f32 to vector<8x8xf32>
    %172 = arith.mulf %170, %171 : vector<8x8xf32>
    %173 = vector.broadcast %126 : vector<1x8xf32> to vector<8x8xf32>
    %174 = arith.addf %172, %173 : vector<8x8xf32>
    %cst_52 = arith.constant dense<0xFF800000> : vector<8xf32>
    %175 = vector.multi_reduction <maximumf>, %174, %cst_52 [1] : vector<8x8xf32> to vector<8xf32>
    %176 = vector.shape_cast %175 : vector<8xf32> to vector<8x1xf32>
    %177 = vector.broadcast %176 : vector<8x1xf32> to vector<8x8xf32>
    %178 = arith.subf %174, %177 : vector<8x8xf32>
    %179 = math.exp %178 : vector<8x8xf32>
    %cst_53 = arith.constant dense<0.000000e+00> : vector<8xf32>
    %180 = vector.multi_reduction <add>, %179, %cst_53 [1] : vector<8x8xf32> to vector<8xf32>
    %181 = vector.shape_cast %180 : vector<8xf32> to vector<8x1xf32>
    %182 = tpu.reciprocal %181 {approx = true} : vector<8x1xf32> -> vector<8x1xf32>
    %183 = vector.broadcast %182 : vector<8x1xf32> to vector<8x8xf32>
    %184 = arith.mulf %179, %183 : vector<8x8xf32>
    %185 = arith.truncf %184 : vector<8x8xf32> to vector<8x8xbf16>
    %cst_54 = arith.constant dense<0.000000e+00> : vector<8x8xf32>
    %186 = tpu.matmul %185, %169, %cst_54 {dimension_numbers = #tpu.dot_dimension_numbers<[1], [0], [0], [1], [0, 0, 1, 1], [], []>} : vector<8x8xbf16>, vector<8x8xbf16>, vector<8x8xf32> -> vector<8x8xf32>
    %187 = vector.extract_strided_slice %37 {offsets = [8, 24], sizes = [8, 8], strides = [1, 1]} : vector<16x32xbf16> to vector<8x8xbf16>
    %188 = vector.extract_strided_slice %39 {offsets = [8, 24], sizes = [8, 8], strides = [1, 1]} : vector<16x32xbf16> to vector<8x8xbf16>
    %189 = vector.extract_strided_slice %41 {offsets = [8, 24], sizes = [8, 8], strides = [1, 1]} : vector<16x32xbf16> to vector<8x8xbf16>
    %cst_55 = arith.constant dense<0.000000e+00> : vector<8x8xf32>
    %190 = tpu.matmul %187, %188, %cst_55 {dimension_numbers = #tpu.dot_dimension_numbers<[1], [1], [0], [0], [0, 0, 1, 0], [], []>} : vector<8x8xbf16>, vector<8x8xbf16>, vector<8x8xf32> -> vector<8x8xf32>
    %cst_56 = arith.constant 0.353553385 : f32
    %191 = vector.broadcast %cst_56 : f32 to vector<8x8xf32>
    %192 = arith.mulf %190, %191 : vector<8x8xf32>
    %193 = vector.broadcast %126 : vector<1x8xf32> to vector<8x8xf32>
    %194 = arith.addf %192, %193 : vector<8x8xf32>
    %cst_57 = arith.constant dense<0xFF800000> : vector<8xf32>
    %195 = vector.multi_reduction <maximumf>, %194, %cst_57 [1] : vector<8x8xf32> to vector<8xf32>
    %196 = vector.shape_cast %195 : vector<8xf32> to vector<8x1xf32>
    %197 = vector.broadcast %196 : vector<8x1xf32> to vector<8x8xf32>
    %198 = arith.subf %194, %197 : vector<8x8xf32>
    %199 = math.exp %198 : vector<8x8xf32>
    %cst_58 = arith.constant dense<0.000000e+00> : vector<8xf32>
    %200 = vector.multi_reduction <add>, %199, %cst_58 [1] : vector<8x8xf32> to vector<8xf32>
    %201 = vector.shape_cast %200 : vector<8xf32> to vector<8x1xf32>
    %202 = tpu.reciprocal %201 {approx = true} : vector<8x1xf32> -> vector<8x1xf32>
    %203 = vector.broadcast %202 : vector<8x1xf32> to vector<8x8xf32>
    %204 = arith.mulf %199, %203 : vector<8x8xf32>
    %205 = arith.truncf %204 : vector<8x8xf32> to vector<8x8xbf16>
    %cst_59 = arith.constant dense<0.000000e+00> : vector<8x8xf32>
    %206 = tpu.matmul %205, %189, %cst_59 {dimension_numbers = #tpu.dot_dimension_numbers<[1], [0], [0], [1], [0, 0, 1, 1], [], []>} : vector<8x8xbf16>, vector<8x8xbf16>, vector<8x8xf32> -> vector<8x8xf32>
    %207 = tpu.concatenate %146, %166, %186, %206 in 1 : vector<8x8xf32>, vector<8x8xf32>, vector<8x8xf32>, vector<8x8xf32> -> vector<8x32xf32>
    %208 = tpu.concatenate %124, %207 in 0 : vector<8x32xf32>, vector<8x32xf32> -> vector<16x32xf32>
    %209 = arith.truncf %208 : vector<16x32xf32> to vector<16x32xbf16>
    %c0_60 = arith.constant 0 : index
    %c0_61 = arith.constant 0 : index
    %210 = vector.load %arg7[%c0_60, %c0_61] : memref<32x32xbf16, #tpu.memory_space<vmem>>, vector<32x32xbf16>
    %cst_62 = arith.constant dense<0.000000e+00> : vector<16x32xf32>
    %211 = tpu.matmul %209, %210, %cst_62 {dimension_numbers = #tpu.dot_dimension_numbers<[1], [0], [0], [1], [0, 0, 1, 1], [], []>} : vector<16x32xbf16>, vector<32x32xbf16>, vector<16x32xf32> -> vector<16x32xf32>
    %c0_63 = arith.constant 0 : index
    %c0_64 = arith.constant 0 : index
    %212 = vector.load %arg8[%c0_63, %c0_64] : memref<1x32xf32, #tpu.memory_space<vmem>>, vector<1x32xf32>
    %213 = vector.broadcast %212 : vector<1x32xf32> to vector<16x32xf32>
    %214 = arith.addf %211, %213 : vector<16x32xf32>
    %215 = arith.addf %1, %214 : vector<16x32xf32>
    %c0_65 = arith.constant 0 : index
    %c0_66 = arith.constant 0 : index
    %216 = vector.load %arg9[%c0_65, %c0_66] : memref<1x32xf32, #tpu.memory_space<vmem>>, vector<1x32xf32>
    %c0_67 = arith.constant 0 : index
    %c0_68 = arith.constant 0 : index
    %217 = vector.load %arg10[%c0_67, %c0_68] : memref<1x32xf32, #tpu.memory_space<vmem>>, vector<1x32xf32>
    %cst_69 = arith.constant dense<0.000000e+00> : vector<16xf32>
    %218 = vector.multi_reduction <add>, %215, %cst_69 [1] : vector<16x32xf32> to vector<16xf32>
    %219 = vector.shape_cast %218 : vector<16xf32> to vector<16x1xf32>
    %cst_70 = arith.constant 3.200000e+01 : f32
    %220 = vector.broadcast %cst_70 : f32 to vector<16x1xf32>
    %221 = arith.divf %219, %220 : vector<16x1xf32>
    %222 = vector.broadcast %221 : vector<16x1xf32> to vector<16x32xf32>
    %223 = arith.subf %215, %222 : vector<16x32xf32>
    %224 = arith.mulf %223, %223 : vector<16x32xf32>
    %cst_71 = arith.constant dense<0.000000e+00> : vector<16xf32>
    %225 = vector.multi_reduction <add>, %224, %cst_71 [1] : vector<16x32xf32> to vector<16xf32>
    %226 = vector.shape_cast %225 : vector<16xf32> to vector<16x1xf32>
    %cst_72 = arith.constant 3.100000e+01 : f32
    %227 = vector.broadcast %cst_72 : f32 to vector<16x1xf32>
    %228 = arith.divf %226, %227 : vector<16x1xf32>
    %229 = math.sqrt %228 : vector<16x1xf32>
    %230 = vector.broadcast %216 : vector<1x32xf32> to vector<16x32xf32>
    %231 = arith.mulf %230, %223 : vector<16x32xf32>
    %cst_73 = arith.constant 9.99999997E-7 : f32
    %232 = vector.broadcast %cst_73 : f32 to vector<16x1xf32>
    %233 = arith.addf %229, %232 : vector<16x1xf32>
    %234 = vector.broadcast %233 : vector<16x1xf32> to vector<16x32xf32>
    %235 = arith.divf %231, %234 : vector<16x32xf32>
    %236 = vector.broadcast %217 : vector<1x32xf32> to vector<16x32xf32>
    %237 = arith.addf %235, %236 : vector<16x32xf32>
    %238 = arith.truncf %237 : vector<16x32xf32> to vector<16x32xbf16>
    %c0_74 = arith.constant 0 : index
    %c0_75 = arith.constant 0 : index
    %239 = vector.load %arg11[%c0_74, %c0_75] : memref<32x64xbf16, #tpu.memory_space<vmem>>, vector<32x64xbf16>
    %cst_76 = arith.constant dense<0.000000e+00> : vector<16x64xf32>
    %240 = tpu.matmul %238, %239, %cst_76 {dimension_numbers = #tpu.dot_dimension_numbers<[1], [0], [0], [1], [0, 0, 1, 1], [], []>} : vector<16x32xbf16>, vector<32x64xbf16>, vector<16x64xf32> -> vector<16x64xf32>
    %c0_77 = arith.constant 0 : index
    %c0_78 = arith.constant 0 : index
    %241 = vector.load %arg12[%c0_77, %c0_78] : memref<1x64xf32, #tpu.memory_space<vmem>>, vector<1x64xf32>
    %242 = vector.broadcast %241 : vector<1x64xf32> to vector<16x64xf32>
    %243 = arith.addf %240, %242 : vector<16x64xf32>
    %cst_79 = arith.constant 0.000000e+00 : f32
    %244 = vector.broadcast %cst_79 : f32 to vector<16x64xf32>
    %245 = arith.maximumf %243, %244 : vector<16x64xf32>
    %246 = arith.truncf %245 : vector<16x64xf32> to vector<16x64xbf16>
    %c0_80 = arith.constant 0 : index
    %c0_81 = arith.constant 0 : index
    %247 = vector.load %arg13[%c0_80, %c0_81] : memref<64x32xbf16, #tpu.memory_space<vmem>>, vector<64x32xbf16>
    %cst_82 = arith.constant dense<0.000000e+00> : vector<16x32xf32>
    %248 = tpu.matmul %246, %247, %cst_82 {dimension_numbers = #tpu.dot_dimension_numbers<[1], [0], [0], [1], [0, 0, 1, 1], [], []>} : vector<16x64xbf16>, vector<64x32xbf16>, vector<16x32xf32> -> vector<16x32xf32>
    %c0_83 = arith.constant 0 : index
    %c0_84 = arith.constant 0 : index
    %249 = vector.load %arg14[%c0_83, %c0_84] : memref<1x32xf32, #tpu.memory_space<vmem>>, vector<1x32xf32>
    %250 = vector.broadcast %249 : vector<1x32xf32> to vector<16x32xf32>
    %251 = arith.addf %248, %250 : vector<16x32xf32>
    %252 = arith.addf %215, %251 : vector<16x32xf32>
    %253 = vector.shape_cast %252 : vector<16x32xf32> to vector<2x8x32xf32>
    %c0_85 = arith.constant 0 : index
    %c0_86 = arith.constant 0 : index
    %c0_87 = arith.constant 0 : index
    %254 = vector.load %arg15[%c0_85, %c0_86, %c0_87] : memref<2x8x32xf32, #tpu.memory_space<vmem>>, vector<2x8x32xf32>
    tpu.vector_store %arg15[%c0_85, %c0_86, %c0_87], %253 {strides = array<i32>} : memref<2x8x32xf32, #tpu.memory_space<vmem>>, vector<2x8x32xf32>,
    return
  }
  func.func @transform_0(%arg0: i32) -> (i32, i32, i32) {
    %c0_i32 = arith.constant 0 : i32
    %c0_i32_0 = arith.constant 0 : i32
    %c0_i32_1 = arith.constant 0 : i32
    return %arg0, %c0_i32, %c0_i32_0 : i32, i32, i32
  }
  func.func @transform_1(%arg0: i32) -> (i32, i32, i32) {
    %c0_i32 = arith.constant 0 : i32
    %c0_i32_0 = arith.constant 0 : i32
    %c0_i32_1 = arith.constant 0 : i32
    return %arg0, %c0_i32, %c0_i32_0 : i32, i32, i32
  }
  func.func @transform_2(%arg0: i32) -> (i32, i32) {
    %c0_i32 = arith.constant 0 : i32
    %c0_i32_0 = arith.constant 0 : i32
    %c0_i32_1 = arith.constant 0 : i32
    return %c0_i32, %c0_i32_0 : i32, i32
  }
  func.func @transform_3(%arg0: i32) -> (i32, i32) {
    %c0_i32 = arith.constant 0 : i32
    %c0_i32_0 = arith.constant 0 : i32
    %c0_i32_1 = arith.constant 0 : i32
    return %c0_i32, %c0_i32_0 : i32, i32
  }
  func.func @transform_4(%arg0: i32) -> (i32, i32) {
    %c0_i32 = arith.constant 0 : i32
    %c0_i32_0 = arith.constant 0 : i32
    %c0_i32_1 = arith.constant 0 : i32
    return %c0_i32, %c0_i32_0 : i32, i32
  }
  func.func @transform_5(%arg0: i32) -> (i32, i32) {
    %c0_i32 = arith.constant 0 : i32
    %c0_i32_0 = arith.constant 0 : i32
    %c0_i32_1 = arith.constant 0 : i32
    return %c0_i32, %c0_i32_0 : i32, i32
  }
  func.func @transform_6(%arg0: i32) -> (i32, i32) {
    %c0_i32 = arith.constant 0 : i32
    %c0_i32_0 = arith.constant 0 : i32
    %c0_i32_1 = arith.constant 0 : i32
    return %c0_i32, %c0_i32_0 : i32, i32
  }
  func.func @transform_7(%arg0: i32) -> (i32, i32) {
    %c0_i32 = arith.constant 0 : i32
    %c0_i32_0 = arith.constant 0 : i32
    %c0_i32_1 = arith.constant 0 : i32
    return %c0_i32, %c0_i32_0 : i32, i32
  }
  func.func @transform_8(%arg0: i32) -> (i32, i32) {
    %c0_i32 = arith.constant 0 : i32
    %c0_i32_0 = arith.constant 0 : i32
    %c0_i32_1 = arith.constant 0 : i32
    return %c0_i32, %c0_i32_0 : i32, i32
  }
  func.func @transform_9(%arg0: i32) -> (i32, i32) {
    %c0_i32 = arith.constant 0 : i32
    %c0_i32_0 = arith.constant 0 : i32
    %c0_i32_1 = arith.constant 0 : i32
    return %c0_i32, %c0_i32_0 : i32, i32
  }
  func.func @transform_10(%arg0: i32) -> (i32, i32) {
    %c0_i32 = arith.constant 0 : i32
    %c0_i32_0 = arith.constant 0 : i32
    %c0_i32_1 = arith.constant 0 : i32
    return %c0_i32, %c0_i32_0 : i32, i32
  }
  func.func @transform_11(%arg0: i32) -> (i32, i32) {
    %c0_i32 = arith.constant 0 : i32
    %c0_i32_0 = arith.constant 0 : i32
    %c0_i32_1 = arith.constant 0 : i32
    return %c0_i32, %c0_i32_0 : i32, i32
  }
  func.func @transform_12(%arg0: i32) -> (i32, i32) {
    %c0_i32 = arith.constant 0 : i32
    %c0_i32_0 = arith.constant 0 : i32
    %c0_i32_1 = arith.constant 0 : i32
    return %c0_i32, %c0_i32_0 : i32, i32
  }
  func.func @transform_13(%arg0: i32) -> (i32, i32) {
    %c0_i32 = arith.constant 0 : i32
    %c0_i32_0 = arith.constant 0 : i32
    %c0_i32_1 = arith.constant 0 : i32
    return %c0_i32, %c0_i32_0 : i32, i32
  }
  func.func @transform_14(%arg0: i32) -> (i32, i32, i32) {
    %c0_i32 = arith.constant 0 : i32
    %c0_i32_0 = arith.constant 0 : i32
    %c0_i32_1 = arith.constant 0 : i32
    return %arg0, %c0_i32, %c0_i32_0 : i32, i32, i32
  }
}

</mosaic_0001>

<llo_original>
// kernel: tpu_custom_call.1
$region0: #{tpu_custom_call.1}
  #allocation0 [shape = 'u32[]', space=smem, size = 0x4, offset = 0x4, fixed_abs, tag = 'smem constant byte address 0x4 - core index']
  #allocation1 [shape = 'u32[144,128]{1,0:T(1,128)}', space=vmem, size = 0x12000, scoped, tag = 'internal scratch']
  %s0 = inlined_call_operand.vmem [shape: f32[4,8,32], index: 0, kind: input, shape index: {}]
  %s1 = inlined_call_operand.hbm [shape: s32[4,1,8], index: 1, kind: input, shape index: {}]
  %s2 = inlined_call_operand.hbm [shape: f32[1,32], index: 2, kind: input, shape index: {}]
  %s3 = inlined_call_operand.hbm [shape: f32[1,32], index: 3, kind: input, shape index: {}]
  %s4 = inlined_call_operand.vmem [shape: bf16[32,96], index: 4, kind: input, shape index: {}]
  %s5 = inlined_call_operand.hbm [shape: f32[1,96], index: 5, kind: input, shape index: {}]
  %s6 = inlined_call_operand.hbm [shape: bf16[32,32], index: 6, kind: input, shape index: {}]
  %s7 = inlined_call_operand.hbm [shape: f32[1,32], index: 7, kind: input, shape index: {}]
  %s8 = inlined_call_operand.hbm [shape: f32[1,32], index: 8, kind: input, shape index: {}]
  %s9 = inlined_call_operand.hbm [shape: f32[1,32], index: 9, kind: input, shape index: {}]
  %s10 = inlined_call_operand.vmem [shape: bf16[32,64], index: 10, kind: input, shape index: {}]
  %s11 = inlined_call_operand.vmem [shape: f32[1,64], index: 11, kind: input, shape index: {}]
  %s12 = inlined_call_operand.vmem [shape: bf16[64,32], index: 12, kind: input, shape index: {}]
  %s13 = inlined_call_operand.vmem [shape: f32[1,32], index: 13, kind: input, shape index: {}]
  %s14 = inlined_call_operand.hbm [shape: f32[4,8,32], index: 14, kind: output, shape index: {}]
  %s15 = sld [smem:[#allocation0]]
  $region121: #{tpu_custom_call.1} parent=0
    _
  %s17 = ssub.s32 1, %s15
  %s18 = scalar_select 0, %s17, %s15
  $region1: #{tpu_custom_call.1} parent=0
    #allocation2 [shape = 'u8[2048]{0}', space=vmem, size = 0x800, scoped, tag = 'input window, operand 1']
    #allocation3 [shape = 's32[2]{0}', space=sflag, size = 0x8, scoped, tag = 'scoped memory for tpu_custom_call.1']
    #allocation4 [shape = 's32[2]{0}', space=sflag, size = 0x8, scoped, tag = 'scoped memory for tpu_custom_call.1']
    #allocation5 [shape = 'u8[512]{0}', space=vmem, size = 0x400, scoped, tag = 'input window, operand 2, single buffered']
    #allocation6 [shape = 's32[1]{0}', space=sflag, size = 0x4, scoped, tag = 'scoped memory for tpu_custom_call.1']
    #allocation7 [shape = 'u8[512]{0}', space=vmem, size = 0x400, scoped, tag = 'input window, operand 3, single buffered']
    #allocation8 [shape = 'u8[512]{0}', space=vmem, size = 0x400, scoped, tag = 'input window, operand 5, single buffered']
    #allocation9 [shape = 's32[1]{0}', space=sflag, size = 0x4, scoped, tag = 'scoped memory for tpu_custom_call.1']
    #allocation10 [shape = 'u8[8192]{0}', space=vmem, size = 0x2000, scoped, tag = 'input window, operand 6, single buffered']
    #allocation11 [shape = 'u8[512]{0}', space=vmem, size = 0x400, scoped, tag = 'input window, operand 7, single buffered']
    #allocation12 [shape = 's32[1]{0}', space=sflag, size = 0x4, scoped, tag = 'scoped memory for tpu_custom_call.1']
    #allocation13 [shape = 'u8[512]{0}', space=vmem, size = 0x400, scoped, tag = 'input window, operand 8, single buffered']
    #allocation14 [shape = 'u8[512]{0}', space=vmem, size = 0x400, scoped, tag = 'input window, operand 9, single buffered']
    #allocation15 [shape = 's32[1]{0}', space=sflag, size = 0x4, scoped, tag = 'scoped memory for tpu_custom_call.1']
    #allocation16 [shape = 'u8[16384]{0}', space=vmem, size = 0x4000, scoped, tag = 'output window, operand 0']
    %19 = vsyncpa [#allocation3], 0
    %s20 = scalar_lea.sflag [#allocation3], 1
    %21 = vsyncpa %s20, 0
    %22 = vsyncpa [#allocation6], 0
    %23 = vsyncpa [#allocation9], 0
    %24 = vsyncpa [#allocation12], 0
    %25 = vsyncpa [#allocation15], 0
    %26 = vsyncpa [#allocation4], 0
    %s27 = scalar_lea.sflag [#allocation4], 1
    %28 = vsyncpa %s27, 0
    loop: start=0, step=1, limit=4
    $region2: #{tpu_custom_call.1} parent=1 // loop_pre_header
      _
    $region3: #{tpu_custom_call.1} parent=1 // loop_header
      %s30 = sphi 0, %s34
      %p31 = scmp.ge.s32.totalorder %s30, 4
      %s40 = sphi 0, %s42
      %s43 = sphi 0, %s40
      %s44 = sphi 0, %s43
      %s60 = sphi 0, %s44
      %s66 = sphi 0, %s68
      %s69 = sphi 0, %s66
      %s70 = sphi 0, %s69
      %s86 = sphi 0, %s70
      %s90 = sphi 0, %s90
      %s92 = sphi 0, %s90
      %s93 = sphi 0, %s92
      %s107 = sphi 0, %s93
      %s111 = sphi 0, %s111
      %s113 = sphi 0, %s111
      %s114 = sphi 0, %s113
      %s128 = sphi 0, %s114
      %s132 = sphi 0, %s132
      %s134 = sphi 0, %s132
      %s135 = sphi 0, %s134
      %s149 = sphi 0, %s135
      %s153 = sphi 0, %s153
      %s155 = sphi 0, %s153
      %s156 = sphi 0, %s155
      %s170 = sphi 0, %s156
      %s174 = sphi 0, %s174
      %s176 = sphi 0, %s174
      %s177 = sphi 0, %s176
      %s191 = sphi 0, %s177
      %s195 = sphi 0, %s195
      %s197 = sphi 0, %s195
      %s198 = sphi 0, %s197
      %s212 = sphi 0, %s198
      %s216 = sphi 0, %s216
      %s218 = sphi 0, %s216
      %s219 = sphi 0, %s218
      %s233 = sphi 0, %s219
      %s237 = sphi 0, %s237
      %s239 = sphi 0, %s237
      %s240 = sphi 0, %s239
      %s254 = sphi 0, %s240
      %s258 = sphi 0, %s258
      %s260 = sphi 0, %s258
      %s261 = sphi 0, %s260
      %s275 = sphi 0, %s261
      %s279 = sphi 0, %s279
      %s281 = sphi 0, %s279
      %s282 = sphi 0, %s281
      %s296 = sphi 0, %s282
      %s300 = sphi 0, %s300
      %s302 = sphi 0, %s300
      %s303 = sphi 0, %s302
      %s317 = sphi 0, %s303
      %s321 = sphi 0, %s321
      %s323 = sphi 0, %s321
      %s324 = sphi 0, %s323
      %s338 = sphi 0, %s324
      %s344 = sphi 0, %s346
      %s347 = sphi 0, %s344
      %s348 = sphi 0, %s347
      %s364 = sphi 0, %s348
    $region4: #{tpu_custom_call.1} parent=1 // loop_header_branch
      %33 = sbr.rel (%p31) target = $region8
    $region5: #{tpu_custom_call.1} parent=1 // loop_body
      %s35 = ssub.s32 %s30, 1
      %s36 = ssub.s32 %s30, 2
      %s37 = sadd.s32 %s30, 1
      %s38 = ssub.s32 %s30, %s37
      %p39 = scmp.eq.s32.totalorder %s38, 0
      %s41 = sadd.s32 %s40, 1
      %s42 = scalar_select %p39, %s40, %s41
      %p45 = pneg %p39
      %p46 = scmp.eq.s32.totalorder %s30, 1
      %p47 = por %p45, %p46
      %p48 = scmp.ne.s32.totalorder %s40, %s43
      %p49 = scmp.eq.s32.totalorder %s30, 0
      %p50 = por %p48, %p49
      %p51 = scmp.ne.s32.totalorder %s40, %s43
      %p52 = scmp.eq.s32.totalorder %s35, 1
      %p53 = por %p51, %p52
      %p54 = scmp.ne.s32.totalorder %s43, %s44
      %p55 = scmp.eq.s32.totalorder %s35, 0
      %p56 = por %p54, %p55
      %p57 = scmp.ne.s32.totalorder %s43, %s44
      %p58 = scmp.eq.s32.totalorder %s36, 1
      %p59 = por %p57, %p58
      %p61 = scmp.ne.s32.totalorder %s44, %s60
      %p62 = scmp.eq.s32.totalorder %s36, 0
      %p63 = por %p61, %p62
      %s64 = ssub.s32 %s30, %s37
      %p65 = scmp.eq.s32.totalorder %s64, 0
      %s67 = sadd.s32 %s66, 1
      %s68 = scalar_select %p65, %s66, %s67
      %p71 = pneg %p65
      %p72 = scmp.eq.s32.totalorder %s30, 1
      %p73 = por %p71, %p72
      %p74 = scmp.ne.s32.totalorder %s66, %s69
      %p75 = scmp.eq.s32.totalorder %s30, 0
      %p76 = por %p74, %p75
      %p77 = scmp.ne.s32.totalorder %s66, %s69
      %p78 = scmp.eq.s32.totalorder %s35, 1
      %p79 = por %p77, %p78
      %p80 = scmp.ne.s32.totalorder %s69, %s70
      %p81 = scmp.eq.s32.totalorder %s35, 0
      %p82 = por %p80, %p81
      %p83 = scmp.ne.s32.totalorder %s69, %s70
      %p84 = scmp.eq.s32.totalorder %s36, 1
      %p85 = por %p83, %p84
      %p87 = scmp.ne.s32.totalorder %s70, %s86
      %p88 = scmp.eq.s32.totalorder %s36, 0
      %p89 = por %p87, %p88
      %s91 = sadd.s32 %s90, 1
      %p94 = scmp.eq.s32.totalorder %s30, 1
      %p95 = scmp.ne.s32.totalorder %s90, %s92
      %p96 = scmp.eq.s32.totalorder %s30, 0
      %p97 = por %p95, %p96
      %p98 = scmp.ne.s32.totalorder %s90, %s92
      %p99 = scmp.eq.s32.totalorder %s35, 1
      %p100 = por %p98, %p99
      %p101 = scmp.ne.s32.totalorder %s92, %s93
      %p102 = scmp.eq.s32.totalorder %s35, 0
      %p103 = por %p101, %p102
      %p104 = scmp.ne.s32.totalorder %s92, %s93
      %p105 = scmp.eq.s32.totalorder %s36, 1
      %p106 = por %p104, %p105
      %p108 = scmp.ne.s32.totalorder %s93, %s107
      %p109 = scmp.eq.s32.totalorder %s36, 0
      %p110 = por %p108, %p109
      %s112 = sadd.s32 %s111, 1
      %p115 = scmp.eq.s32.totalorder %s30, 1
      %p116 = scmp.ne.s32.totalorder %s111, %s113
      %p117 = scmp.eq.s32.totalorder %s30, 0
      %p118 = por %p116, %p117
      %p119 = scmp.ne.s32.totalorder %s111, %s113
      %p120 = scmp.eq.s32.totalorder %s35, 1
      %p121 = por %p119, %p120
      %p122 = scmp.ne.s32.totalorder %s113, %s114
      %p123 = scmp.eq.s32.totalorder %s35, 0
      %p124 = por %p122, %p123
      %p125 = scmp.ne.s32.totalorder %s113, %s114
      %p126 = scmp.eq.s32.totalorder %s36, 1
      %p127 = por %p125, %p126
      %p129 = scmp.ne.s32.totalorder %s114, %s128
      %p130 = scmp.eq.s32.totalorder %s36, 0
      %p131 = por %p129, %p130
      %s133 = sadd.s32 %s132, 1
      %p136 = scmp.eq.s32.totalorder %s30, 1
      %p137 = scmp.ne.s32.totalorder %s132, %s134
      %p138 = scmp.eq.s32.totalorder %s30, 0
      %p139 = por %p137, %p138
      %p140 = scmp.ne.s32.totalorder %s132, %s134
      %p141 = scmp.eq.s32.totalorder %s35, 1
      %p142 = por %p140, %p141
      %p143 = scmp.ne.s32.totalorder %s134, %s135
      %p144 = scmp.eq.s32.totalorder %s35, 0
      %p145 = por %p143, %p144
      %p146 = scmp.ne.s32.totalorder %s134, %s135
      %p147 = scmp.eq.s32.totalorder %s36, 1
      %p148 = por %p146, %p147
      %p150 = scmp.ne.s32.totalorder %s135, %s149
      %p151 = scmp.eq.s32.totalorder %s36, 0
      %p152 = por %p150, %p151
      %s154 = sadd.s32 %s153, 1
      %p157 = scmp.eq.s32.totalorder %s30, 1
      %p158 = scmp.ne.s32.totalorder %s153, %s155
      %p159 = scmp.eq.s32.totalorder %s30, 0
      %p160 = por %p158, %p159
      %p161 = scmp.ne.s32.totalorder %s153, %s155
      %p162 = scmp.eq.s32.totalorder %s35, 1
      %p163 = por %p161, %p162
      %p164 = scmp.ne.s32.totalorder %s155, %s156
      %p165 = scmp.eq.s32.totalorder %s35, 0
      %p166 = por %p164, %p165
      %p167 = scmp.ne.s32.totalorder %s155, %s156
      %p168 = scmp.eq.s32.totalorder %s36, 1
      %p169 = por %p167, %p168
      %p171 = scmp.ne.s32.totalorder %s156, %s170
      %p172 = scmp.eq.s32.totalorder %s36, 0
      %p173 = por %p171, %p172
      %s175 = sadd.s32 %s174, 1
      %p178 = scmp.eq.s32.totalorder %s30, 1
      %p179 = scmp.ne.s32.totalorder %s174, %s176
      %p180 = scmp.eq.s32.totalorder %s30, 0
      %p181 = por %p179, %p180
      %p182 = scmp.ne.s32.totalorder %s174, %s176
      %p183 = scmp.eq.s32.totalorder %s35, 1
      %p184 = por %p182, %p183
      %p185 = scmp.ne.s32.totalorder %s176, %s177
      %p186 = scmp.eq.s32.totalorder %s35, 0
      %p187 = por %p185, %p186
      %p188 = scmp.ne.s32.totalorder %s176, %s177
      %p189 = scmp.eq.s32.totalorder %s36, 1
      %p190 = por %p188, %p189
      %p192 = scmp.ne.s32.totalorder %s177, %s191
      %p193 = scmp.eq.s32.totalorder %s36, 0
      %p194 = por %p192, %p193
      %s196 = sadd.s32 %s195, 1
      %p199 = scmp.eq.s32.totalorder %s30, 1
      %p200 = scmp.ne.s32.totalorder %s195, %s197
      %p201 = scmp.eq.s32.totalorder %s30, 0
      %p202 = por %p200, %p201
      %p203 = scmp.ne.s32.totalorder %s195, %s197
      %p204 = scmp.eq.s32.totalorder %s35, 1
      %p205 = por %p203, %p204
      %p206 = scmp.ne.s32.totalorder %s197, %s198
      %p207 = scmp.eq.s32.totalorder %s35, 0
      %p208 = por %p206, %p207
      %p209 = scmp.ne.s32.totalorder %s197, %s198
      %p210 = scmp.eq.s32.totalorder %s36, 1
      %p211 = por %p209, %p210
      %p213 = scmp.ne.s32.totalorder %s198, %s212
      %p214 = scmp.eq.s32.totalorder %s36, 0
      %p215 = por %p213, %p214
      %s217 = sadd.s32 %s216, 1
      %p220 = scmp.eq.s32.totalorder %s30, 1
      %p221 = scmp.ne.s32.totalorder %s216, %s218
      %p222 = scmp.eq.s32.totalorder %s30, 0
      %p223 = por %p221, %p222
      %p224 = scmp.ne.s32.totalorder %s216, %s218
      %p225 = scmp.eq.s32.totalorder %s35, 1
      %p226 = por %p224, %p225
      %p227 = scmp.ne.s32.totalorder %s218, %s219
      %p228 = scmp.eq.s32.totalorder %s35, 0
      %p229 = por %p227, %p228
      %p230 = scmp.ne.s32.totalorder %s218, %s219
      %p231 = scmp.eq.s32.totalorder %s36, 1
      %p232 = por %p230, %p231
      %p234 = scmp.ne.s32.totalorder %s219, %s233
      %p235 = scmp.eq.s32.totalorder %s36, 0
      %p236 = por %p234, %p235
      %s238 = sadd.s32 %s237, 1
      %p241 = scmp.eq.s32.totalorder %s30, 1
      %p242 = scmp.ne.s32.totalorder %s237, %s239
      %p243 = scmp.eq.s32.totalorder %s30, 0
      %p244 = por %p242, %p243
      %p245 = scmp.ne.s32.totalorder %s237, %s239
      %p246 = scmp.eq.s32.totalorder %s35, 1
      %p247 = por %p245, %p246
      %p248 = scmp.ne.s32.totalorder %s239, %s240
      %p249 = scmp.eq.s32.totalorder %s35, 0
      %p250 = por %p248, %p249
      %p251 = scmp.ne.s32.totalorder %s239, %s240
      %p252 = scmp.eq.s32.totalorder %s36, 1
      %p253 = por %p251, %p252
      %p255 = scmp.ne.s32.totalorder %s240, %s254
      %p256 = scmp.eq.s32.totalorder %s36, 0
      %p257 = por %p255, %p256
      %s259 = sadd.s32 %s258, 1
      %p262 = scmp.eq.s32.totalorder %s30, 1
      %p263 = scmp.ne.s32.totalorder %s258, %s260
      %p264 = scmp.eq.s32.totalorder %s30, 0
      %p265 = por %p263, %p264
      %p266 = scmp.ne.s32.totalorder %s258, %s260
      %p267 = scmp.eq.s32.totalorder %s35, 1
      %p268 = por %p266, %p267
      %p269 = scmp.ne.s32.totalorder %s260, %s261
      %p270 = scmp.eq.s32.totalorder %s35, 0
      %p271 = por %p269, %p270
      %p272 = scmp.ne.s32.totalorder %s260, %s261
      %p273 = scmp.eq.s32.totalorder %s36, 1
      %p274 = por %p272, %p273
      %p276 = scmp.ne.s32.totalorder %s261, %s275
      %p277 = scmp.eq.s32.totalorder %s36, 0
      %p278 = por %p276, %p277
      %s280 = sadd.s32 %s279, 1
      %p283 = scmp.eq.s32.totalorder %s30, 1
      %p284 = scmp.ne.s32.totalorder %s279, %s281
      %p285 = scmp.eq.s32.totalorder %s30, 0
      %p286 = por %p284, %p285
      %p287 = scmp.ne.s32.totalorder %s279, %s281
      %p288 = scmp.eq.s32.totalorder %s35, 1
      %p289 = por %p287, %p288
      %p290 = scmp.ne.s32.totalorder %s281, %s282
      %p291 = scmp.eq.s32.totalorder %s35, 0
      %p292 = por %p290, %p291
      %p293 = scmp.ne.s32.totalorder %s281, %s282
      %p294 = scmp.eq.s32.totalorder %s36, 1
      %p295 = por %p293, %p294
      %p297 = scmp.ne.s32.totalorder %s282, %s296
      %p298 = scmp.eq.s32.totalorder %s36, 0
      %p299 = por %p297, %p298
      %s301 = sadd.s32 %s300, 1
      %p304 = scmp.eq.s32.totalorder %s30, 1
      %p305 = scmp.ne.s32.totalorder %s300, %s302
      %p306 = scmp.eq.s32.totalorder %s30, 0
      %p307 = por %p305, %p306
      %p308 = scmp.ne.s32.totalorder %s300, %s302
      %p309 = scmp.eq.s32.totalorder %s35, 1
      %p310 = por %p308, %p309
      %p311 = scmp.ne.s32.totalorder %s302, %s303
      %p312 = scmp.eq.s32.totalorder %s35, 0
      %p313 = por %p311, %p312
      %p314 = scmp.ne.s32.totalorder %s302, %s303
      %p315 = scmp.eq.s32.totalorder %s36, 1
      %p316 = por %p314, %p315
      %p318 = scmp.ne.s32.totalorder %s303, %s317
      %p319 = scmp.eq.s32.totalorder %s36, 0
      %p320 = por %p318, %p319
      %s322 = sadd.s32 %s321, 1
      %p325 = scmp.eq.s32.totalorder %s30, 1
      %p326 = scmp.ne.s32.totalorder %s321, %s323
      %p327 = scmp.eq.s32.totalorder %s30, 0
      %p328 = por %p326, %p327
      %p329 = scmp.ne.s32.totalorder %s321, %s323
      %p330 = scmp.eq.s32.totalorder %s35, 1
      %p331 = por %p329, %p330
      %p332 = scmp.ne.s32.totalorder %s323, %s324
      %p333 = scmp.eq.s32.totalorder %s35, 0
      %p334 = por %p332, %p333
      %p335 = scmp.ne.s32.totalorder %s323, %s324
      %p336 = scmp.eq.s32.totalorder %s36, 1
      %p337 = por %p335, %p336
      %p339 = scmp.ne.s32.totalorder %s324, %s338
      %p340 = scmp.eq.s32.totalorder %s36, 0
      %p341 = por %p339, %p340
      %s342 = ssub.s32 %s30, %s37
      %p343 = scmp.eq.s32.totalorder %s342, 0
      %s345 = sadd.s32 %s344, 1
      %s346 = scalar_select %p343, %s344, %s345
      %p349 = pneg %p343
      %p350 = scmp.eq.s32.totalorder %s30, 1
      %p351 = por %p349, %p350
      %p352 = scmp.ne.s32.totalorder %s344, %s347
      %p353 = scmp.eq.s32.totalorder %s30, 0
      %p354 = por %p352, %p353
      %p355 = scmp.ne.s32.totalorder %s344, %s347
      %p356 = scmp.eq.s32.totalorder %s35, 1
      %p357 = por %p355, %p356
      %p358 = scmp.ne.s32.totalorder %s347, %s348
      %p359 = scmp.eq.s32.totalorder %s35, 0
      %p360 = por %p358, %p359
      %p361 = scmp.ne.s32.totalorder %s347, %s348
      %p362 = scmp.eq.s32.totalorder %s36, 1
      %p363 = por %p361, %p362
      %p365 = scmp.ne.s32.totalorder %s348, %s364
      %p366 = scmp.eq.s32.totalorder %s36, 0
      %p367 = por %p365, %p366
      %p368 = scmp.le.s32.totalorder 1, %s30
      %p369 = scmp.lt.s32.totalorder %s30, 3
      %p370 = pnand %p368, %p369
      %p371 = pneg %p370
      // Predicated region
      $region9: #{tpu_custom_call.1} parent=5 // pred_check
        _
      $region10: #{tpu_custom_call.1} parent=5 // pred_check_branch
        %373 = sbr.rel (%p370) target = $region12
      $region11: #{tpu_custom_call.1} parent=5 // pred_region
        %s374 = ssub.s32 %s30, 1
        // Predicated region
        $region13: #{tpu_custom_call.1} parent=11 // pred_check
          %p375 = pneg %p103
        $region14: #{tpu_custom_call.1} parent=11 // pred_check_branch
          %377 = sbr.rel (%p375) target = $region16
        $region15: #{tpu_custom_call.1} parent=11 // pred_region
          %s379 = ssub.s32 16, 16
          %380 = vsyncadd [#allocation6], %s379
          %s382 = sshll.u32 [#allocation5], 4
          %s383 = int_to_ptr.vmem [resolvable:$true] %s382
          %385 = dma.hbm_to_vmem [thread:$0]  %s2, 16, %s383, [#allocation6]
        $region16: #{tpu_custom_call.1} parent=11 // pred_fallthru
          _
        // Predicated region
        $region17: #{tpu_custom_call.1} parent=11 // pred_check
          %p386 = pneg %p124
        $region18: #{tpu_custom_call.1} parent=11 // pred_check_branch
          %388 = sbr.rel (%p386) target = $region20
        $region19: #{tpu_custom_call.1} parent=11 // pred_region
          %s390 = ssub.s32 16, 16
          %391 = vsyncadd [#allocation6], %s390
          %s393 = sshll.u32 [#allocation7], 4
          %s394 = int_to_ptr.vmem [resolvable:$true] %s393
          %396 = dma.hbm_to_vmem [thread:$0]  %s3, 16, %s394, [#allocation6]
        $region20: #{tpu_custom_call.1} parent=11 // pred_fallthru
          _
        // Predicated region
        $region21: #{tpu_custom_call.1} parent=11 // pred_check
          %p397 = pneg %p145
        $region22: #{tpu_custom_call.1} parent=11 // pred_check_branch
          %399 = sbr.rel (%p397) target = $region24
        $region23: #{tpu_custom_call.1} parent=11 // pred_region
          _
        $region24: #{tpu_custom_call.1} parent=11 // pred_fallthru
          _
        // Predicated region
        $region25: #{tpu_custom_call.1} parent=11 // pred_check
          %p400 = pneg %p166
        $region26: #{tpu_custom_call.1} parent=11 // pred_check_branch
          %402 = sbr.rel (%p400) target = $region28
        $region27: #{tpu_custom_call.1} parent=11 // pred_region
          %s404 = ssub.s32 16, 16
          %405 = vsyncadd [#allocation9], %s404
          %s407 = sshll.u32 [#allocation8], 4
          %s408 = int_to_ptr.vmem [resolvable:$true] %s407
          %410 = dma.hbm_to_vmem [thread:$0]  %s5, 16, %s408, [#allocation9]
        $region28: #{tpu_custom_call.1} parent=11 // pred_fallthru
          _
        // Predicated region
        $region29: #{tpu_custom_call.1} parent=11 // pred_check
          %p411 = pneg %p187
        $region30: #{tpu_custom_call.1} parent=11 // pred_check_branch
          %413 = sbr.rel (%p411) target = $region32
        $region31: #{tpu_custom_call.1} parent=11 // pred_region
          %s415 = ssub.s32 256, 256
          %416 = vsyncadd [#allocation9], %s415
          %s417 = sshll.u32 [#allocation10], 4
          %s418 = int_to_ptr.vmem [resolvable:$true] %s417
          %423 = dma.hbm_to_vmem [thread:$0]  %s6, 256, %s418, [#allocation9], 64, 64, 4
        $region32: #{tpu_custom_call.1} parent=11 // pred_fallthru
          _
        // Predicated region
        $region33: #{tpu_custom_call.1} parent=11 // pred_check
          %p424 = pneg %p208
        $region34: #{tpu_custom_call.1} parent=11 // pred_check_branch
          %426 = sbr.rel (%p424) target = $region36
        $region35: #{tpu_custom_call.1} parent=11 // pred_region
          %s428 = ssub.s32 16, 16
          %429 = vsyncadd [#allocation12], %s428
          %s431 = sshll.u32 [#allocation11], 4
          %s432 = int_to_ptr.vmem [resolvable:$true] %s431
          %434 = dma.hbm_to_vmem [thread:$0]  %s7, 16, %s432, [#allocation12]
        $region36: #{tpu_custom_call.1} parent=11 // pred_fallthru
          _
        // Predicated region
        $region37: #{tpu_custom_call.1} parent=11 // pred_check
          %p435 = pneg %p229
        $region38: #{tpu_custom_call.1} parent=11 // pred_check_branch
          %437 = sbr.rel (%p435) target = $region40
        $region39: #{tpu_custom_call.1} parent=11 // pred_region
          %s439 = ssub.s32 16, 16
          %440 = vsyncadd [#allocation12], %s439
          %s442 = sshll.u32 [#allocation13], 4
          %s443 = int_to_ptr.vmem [resolvable:$true] %s442
          %445 = dma.hbm_to_vmem [thread:$0]  %s8, 16, %s443, [#allocation12]
        $region40: #{tpu_custom_call.1} parent=11 // pred_fallthru
          _
        // Predicated region
        $region41: #{tpu_custom_call.1} parent=11 // pred_check
          %p446 = pneg %p250
        $region42: #{tpu_custom_call.1} parent=11 // pred_check_branch
          %448 = sbr.rel (%p446) target = $region44
        $region43: #{tpu_custom_call.1} parent=11 // pred_region
          %s450 = ssub.s32 16, 16
          %451 = vsyncadd [#allocation15], %s450
          %s453 = sshll.u32 [#allocation14], 4
          %s454 = int_to_ptr.vmem [resolvable:$true] %s453
          %456 = dma.hbm_to_vmem [thread:$0]  %s9, 16, %s454, [#allocation15]
        $region44: #{tpu_custom_call.1} parent=11 // pred_fallthru
          _
        // Predicated region
        $region45: #{tpu_custom_call.1} parent=11 // pred_check
          %p457 = pneg %p271
        $region46: #{tpu_custom_call.1} parent=11 // pred_check_branch
          %459 = sbr.rel (%p457) target = $region48
        $region47: #{tpu_custom_call.1} parent=11 // pred_region
          _
        $region48: #{tpu_custom_call.1} parent=11 // pred_fallthru
          _
        // Predicated region
        $region49: #{tpu_custom_call.1} parent=11 // pred_check
          %p460 = pneg %p292
        $region50: #{tpu_custom_call.1} parent=11 // pred_check_branch
          %462 = sbr.rel (%p460) target = $region52
        $region51: #{tpu_custom_call.1} parent=11 // pred_region
          _
        $region52: #{tpu_custom_call.1} parent=11 // pred_fallthru
          _
        // Predicated region
        $region53: #{tpu_custom_call.1} parent=11 // pred_check
          %p463 = pneg %p313
        $region54: #{tpu_custom_call.1} parent=11 // pred_check_branch
          %465 = sbr.rel (%p463) target = $region56
        $region55: #{tpu_custom_call.1} parent=11 // pred_region
          _
        $region56: #{tpu_custom_call.1} parent=11 // pred_fallthru
          _
        // Predicated region
        $region57: #{tpu_custom_call.1} parent=11 // pred_check
          %p466 = pneg %p334
        $region58: #{tpu_custom_call.1} parent=11 // pred_check_branch
          %468 = sbr.rel (%p466) target = $region60
        $region59: #{tpu_custom_call.1} parent=11 // pred_region
          _
        $region60: #{tpu_custom_call.1} parent=11 // pred_fallthru
          _
      $region12: #{tpu_custom_call.1} parent=5 // pred_fallthru
        _
      %p469 = scmp.lt.s32.totalorder %s30, 2
      // Predicated region
      $region61: #{tpu_custom_call.1} parent=5 // pred_check
        %p470 = pneg %p469
      $region62: #{tpu_custom_call.1} parent=5 // pred_check_branch
        %472 = sbr.rel (%p470) target = $region64
      $region63: #{tpu_custom_call.1} parent=5 // pred_region
        // Predicated region
        $region65: #{tpu_custom_call.1} parent=63 // pred_check
          %p473 = pneg %p50
        $region66: #{tpu_custom_call.1} parent=63 // pred_check_branch
          %475 = sbr.rel (%p473) target = $region68
        $region67: #{tpu_custom_call.1} parent=63 // pred_region
          %s476 = smul.u32 2, %s30
          %p477 = scmp.lt.s32.totalorder %s476, 3
          %s478 = scalar_select %p477, %s476, 3
          %s479 = smul.addr %s478, 8
          %s480 = scalar_lea.vmem %s0, %s479
          %s481 = smul.u32 2, %s30
        $region68: #{tpu_custom_call.1} parent=63 // pred_fallthru
          _
        // Predicated region
        $region69: #{tpu_custom_call.1} parent=63 // pred_check
          %p482 = pneg %p76
        $region70: #{tpu_custom_call.1} parent=63 // pred_check_branch
          %484 = sbr.rel (%p482) target = $region72
        $region71: #{tpu_custom_call.1} parent=63 // pred_region
          %s485 = sand.u32 %s66, 1
          %s486 = scalar_lea.sflag [#allocation3], %s485
          %s487 = sand.u32 %s66, 1
          %s488 = smul.addr %s487, 2
          %s489 = scalar_lea.vmem [#allocation2], %s488
          %s490 = smul.u32 2, %s30
          %s492 = ssub.s32 32, 32
          %493 = vsyncadd %s486, %s492
          %s494 = smul.addr %s490, 16
          %s495 = scalar_lea.hbm %s1, %s494
          %s496 = sshll.u32 %s489, 4
          %s497 = int_to_ptr.vmem [resolvable:$true] %s496
          %502 = dma.hbm_to_vmem [thread:$0]  %s495, 32, %s497, %s486, 16, 16, 1
        $region72: #{tpu_custom_call.1} parent=63 // pred_fallthru
          _
      $region64: #{tpu_custom_call.1} parent=5 // pred_fallthru
        _
      %p503 = scmp.le.s32.totalorder 1, %s30
      %p504 = scmp.lt.s32.totalorder %s30, 3
      %p505 = pnand %p503, %p504
      %p506 = pneg %p505
      // Predicated region
      $region73: #{tpu_custom_call.1} parent=5 // pred_check
        _
      $region74: #{tpu_custom_call.1} parent=5 // pred_check_branch
        %508 = sbr.rel (%p505) target = $region76
      $region75: #{tpu_custom_call.1} parent=5 // pred_region
        %s509 = ssub.s32 %s30, 1
        %s510 = sand.u32 %s69, 1
        %s511 = scalar_lea.sflag [#allocation3], %s510
        %s512 = sand.u32 %s69, 1
        %s513 = smul.addr %s512, 2
        %s514 = scalar_lea.vmem [#allocation2], %s513
        // Predicated region
        $region77: #{tpu_custom_call.1} parent=75 // pred_check
          %p515 = pneg %p82
        $region78: #{tpu_custom_call.1} parent=75 // pred_check_branch
          %517 = sbr.rel (%p515) target = $region80
        $region79: #{tpu_custom_call.1} parent=75 // pred_region
          %518 = dma.done %s511, 32
        $region80: #{tpu_custom_call.1} parent=75 // pred_fallthru
          _
        // Predicated region
        $region81: #{tpu_custom_call.1} parent=75 // pred_check
          %p519 = pneg %p103
        $region82: #{tpu_custom_call.1} parent=75 // pred_check_branch
          %521 = sbr.rel (%p519) target = $region84
        $region83: #{tpu_custom_call.1} parent=75 // pred_region
          %522 = dma.done [#allocation6], 16
        $region84: #{tpu_custom_call.1} parent=75 // pred_fallthru
          _
        // Predicated region
        $region85: #{tpu_custom_call.1} parent=75 // pred_check
          %p523 = pneg %p124
        $region86: #{tpu_custom_call.1} parent=75 // pred_check_branch
          %525 = sbr.rel (%p523) target = $region88
        $region87: #{tpu_custom_call.1} parent=75 // pred_region
          %526 = dma.done [#allocation6], 16
        $region88: #{tpu_custom_call.1} parent=75 // pred_fallthru
          _
        // Predicated region
        $region89: #{tpu_custom_call.1} parent=75 // pred_check
          %p527 = pneg %p166
        $region90: #{tpu_custom_call.1} parent=75 // pred_check_branch
          %529 = sbr.rel (%p527) target = $region92
        $region91: #{tpu_custom_call.1} parent=75 // pred_region
          %530 = dma.done [#allocation9], 16
        $region92: #{tpu_custom_call.1} parent=75 // pred_fallthru
          _
        // Predicated region
        $region93: #{tpu_custom_call.1} parent=75 // pred_check
          %p531 = pneg %p187
        $region94: #{tpu_custom_call.1} parent=75 // pred_check_branch
          %533 = sbr.rel (%p531) target = $region96
        $region95: #{tpu_custom_call.1} parent=75 // pred_region
          %534 = dma.done [#allocation9], 256
        $region96: #{tpu_custom_call.1} parent=75 // pred_fallthru
          _
        // Predicated region
        $region97: #{tpu_custom_call.1} parent=75 // pred_check
          %p535 = pneg %p208
        $region98: #{tpu_custom_call.1} parent=75 // pred_check_branch
          %537 = sbr.rel (%p535) target = $region100
        $region99: #{tpu_custom_call.1} parent=75 // pred_region
          %538 = dma.done [#allocation12], 16
        $region100: #{tpu_custom_call.1} parent=75 // pred_fallthru
          _
        // Predicated region
        $region101: #{tpu_custom_call.1} parent=75 // pred_check
          %p539 = pneg %p229
        $region102: #{tpu_custom_call.1} parent=75 // pred_check_branch
          %541 = sbr.rel (%p539) target = $region104
        $region103: #{tpu_custom_call.1} parent=75 // pred_region
          %542 = dma.done [#allocation12], 16
        $region104: #{tpu_custom_call.1} parent=75 // pred_fallthru
          _
        // Predicated region
        $region105: #{tpu_custom_call.1} parent=75 // pred_check
          %p543 = pneg %p250
        $region106: #{tpu_custom_call.1} parent=75 // pred_check_branch
          %545 = sbr.rel (%p543) target = $region108
        $region107: #{tpu_custom_call.1} parent=75 // pred_region
          %546 = dma.done [#allocation15], 16
        $region108: #{tpu_custom_call.1} parent=75 // pred_fallthru
          _
        %s547 = smul.u32 2, %s35
        %p548 = scmp.lt.s32.totalorder %s547, 3
        %s549 = scalar_select %p548, %s547, 3
        %s550 = smul.addr %s549, 8
        %s551 = scalar_lea.vmem %s0, %s550
        %p552 = pneg %p56
        %p553 = pneg %p53
        %s554 = sand.u32 %s69, 1
        %s555 = scalar_lea.sflag [#allocation3], %s554
        %s556 = sand.u32 %s69, 1
        %s557 = smul.addr %s556, 2
        %s558 = scalar_lea.vmem [#allocation2], %s557
        %p559 = pneg %p82
        %p560 = pneg %p79
        %p561 = pneg %p103
        %p562 = pneg %p100
        %p563 = pneg %p124
        %p564 = pneg %p121
        %p565 = pneg %p145
        %p566 = pneg %p142
        %p567 = pneg %p166
        %p568 = pneg %p163
        %p569 = pneg %p187
        %p570 = pneg %p184
        %p571 = pneg %p208
        %p572 = pneg %p205
        %p573 = pneg %p229
        %p574 = pneg %p226
        %p575 = pneg %p250
        %p576 = pneg %p247
        %p577 = pneg %p271
        %p578 = pneg %p268
        %p579 = pneg %p292
        %p580 = pneg %p289
        %p581 = pneg %p313
        %p582 = pneg %p310
        %p583 = pneg %p334
        %p584 = pneg %p331
        %p585 = pneg %p360
        %p586 = pneg %p357
        %s587 = sand.u32 %s347, 1
        %s588 = scalar_lea.sflag [#allocation4], %s587
        %s589 = sand.u32 %s347, 1
        %s590 = smul.addr %s589, 16
        %s591 = scalar_lea.vmem [#allocation16], %s590
        %s592 = smul.u32 2, %s35
        %p593 = scmp.lt.s32.totalorder %s592, 3
        %s594 = scalar_select %p593, %s592, 3
        %s595 = smul.addr %s594, 8
        %s596 = scalar_lea.vmem %s0, %s595
        %s597 = smul.u32 2, %s35
        %s598 = smul.u32 2, %s35
        %s599 = smul.u32 2, %s35
        %v601 = vld [vmem:[%s596] sm:$0xff]
        %v602 = vld [vmem:[%s596 + $0x8] sm:$0xff]
        %v603 = vld [vmem:[%s514] sm:$0x1]
        %v604 = vld [vmem:[%s514 + $0x1] sm:$0x1]
        %vm605 = vcmp.eq.s32.totalorder %v603, 0
        %vm606 = vcmp.eq.s32.totalorder %v604, 0
        %v607 = vsel %vm605, -1e+09, 0.0
        %v608 = vsel %vm606, -1e+09, 0.0
        %v609 = vld [vmem:[#allocation5] sm:$0x1]
        %v610 = vld [vmem:[#allocation7] sm:$0x1]
        %vm611 = vcmask 261120
        %v612 = vsel %vm611, %v601, 0.0
        %613 = vadd.xlane.f32.xlu0 %v612
        %v614 = vpop.xlane.xlu0 %613
        %v615 = vsel %vm611, %v602, 0.0
        %616 = vadd.xlane.f32.xlu0 %v615
        %v617 = vpop.xlane.xlu0 %616
        %v618 = vrcp.pop 32.0
        %v619 = vmul.f32 %v614, %v618
        %v620 = vmul.f32 %v617, %v618
        %v621 = vsub.f32 %v601, %v619
        %v622 = vsub.f32 %v602, %v620
        %v623 = vmul.f32 %v621, %v621
        %v624 = vmul.f32 %v622, %v622
        %v625 = vsel %vm611, %v623, 0.0
        %626 = vadd.xlane.f32.xlu0 %v625
        %v627 = vpop.xlane.xlu0 %626
        %v628 = vsel %vm611, %v624, 0.0
        %629 = vadd.xlane.f32.xlu0 %v628
        %v630 = vpop.xlane.xlu0 %629
        %v631 = vrcp.pop 31.0
        %v632 = vmul.f32 %v627, %v631
        %v633 = vmul.f32 %v630, %v631
        %v634 = vrsqrt.pop %v632
        %v635 = vmul.f32 %v632, %v634
        %vm636 = vcmp.eq.f32.partialorder %v632, inf
        %v637 = vsel %vm636, %v632, %v635
        %vm638 = vcmp.eq.f32.partialorder %v632, 0.0
        %v639 = vand.u32 %v632, 2147483648
        %v640 = vsel %vm638, %v639, %v637
        %v641 = vrsqrt.pop %v633
        %v642 = vmul.f32 %v633, %v641
        %vm643 = vcmp.eq.f32.partialorder %v633, inf
        %v644 = vsel %vm643, %v633, %v642
        %vm645 = vcmp.eq.f32.partialorder %v633, 0.0
        %v646 = vand.u32 %v633, 2147483648
        %v647 = vsel %vm645, %v646, %v644
        %v649 = vlaneseq
        %v650 = vshrl.u32 %v649, 7
        %v651 = vsub.s32 0, %v650
        %v652 = vrot.slane %v609, %v651
        %v654 = vmul.f32 %v652, %v621
        %v655 = vmul.f32 %v652, %v622
        %v656 = vadd.f32 %v640, 1e-06
        %v657 = vadd.f32 %v647, 1e-06
        %v658 = vrcp.pop %v656
        %v659 = vmul.f32 %v654, %v658
        %v660 = vrcp.pop %v657
        %v661 = vmul.f32 %v655, %v660
        %v663 = vlaneseq
        %v664 = vshrl.u32 %v663, 7
        %v665 = vsub.s32 0, %v664
        %v666 = vrot.slane %v610, %v665
        %v668 = vadd.f32 %v659, %v666
        %v669 = vadd.f32 %v661, %v666
        %v670 = vpack.c.bf16 %v669, %v668
        %v671 = vld [vmem:[%s4] sm:$0xf]
        %v672 = vld [vmem:[%s4 + $0x4] sm:$0xf]
        %v673 = vld [vmem:[%s4 + $0x8] sm:$0xf]
        %v674 = vld [vmem:[%s4 + $0xc] sm:$0xf]
        %v675 = vld [vmem:[#allocation8] sm:$0x1]
        %v677 = vlaneseq
        %v678 = vshrl.u32 %v677, 7
        %v679 = vsub.s32 0, %v678
        %v680 = vrot.slane %v675, %v679
        %v686 = vunpack.c.l.b16 %v671
        %v687 = vunpack.c.l.b16 %v672
        %v688 = vunpack.c.l.b16 %v673
        %v689 = vunpack.c.l.b16 %v674
        %v690 = vpack.c.b16 %v687, %v686
        %v691 = vpack.c.b16 %v689, %v688
        %v695 = vsel %vm611, %v670, 0
        %697 = vmatprep.subr.bf16.mxu0 0
        %698 = vmatpush1.bf16.msra.mxu0 0
        %699 = vmatprep.subr.bf16.mxu0 0
        %700 = vmatpush1.bf16.msra.mxu0 0
        %701 = vmatprep.subr.bf16.mxu0 0
        %702 = vmatpush1.bf16.msra.mxu0 0
        %703 = vmatprep.subr.bf16.mxu0 0
        %704 = vmatpush1.bf16.msra.mxu0 0
        %705 = vmatprep.subr.bf16.mxu0 0
        %706 = vmatpush1.bf16.msra.mxu0 0
        %707 = vmatprep.subr.bf16.mxu0 0
        %708 = vmatpush1.bf16.msra.mxu0 0
        %709 = vmatprep.subr.bf16.mxu0 0
        %710 = vmatpush1.bf16.msra.mxu0 %v691
        %711 = vmatprep.subr.bf16.mxu0 0
        %712 = vmatpush1.bf16.msra.mxu0 %v690
        %713 = vmatprep.subr.bf16.mxu0 0
        %714 = vmatpush2.bf16.msra.mxu0 0
        %715 = vmatprep.subr.bf16.mxu0 0
        %716 = vmatpush2.bf16.msra.mxu0 0
        %717 = vmatprep.subr.bf16.mxu0 0
        %718 = vmatpush2.bf16.msra.mxu0 0
        %719 = vmatprep.subr.bf16.mxu0 0
        %720 = vmatpush2.bf16.msra.mxu0 0
        %721 = vmatprep.subr.bf16.mxu0 0
        %722 = vmatpush2.bf16.msra.mxu0 0
        %723 = vmatprep.subr.bf16.mxu0 0
        %724 = vmatpush2.bf16.msra.mxu0 0
        %725 = vmatprep.subr.bf16.mxu0 0
        %726 = vmatpush2.bf16.msra.mxu0 0
        %727 = vmatprep.subr.bf16.mxu0 0
        %728 = vmatpush2.bf16.msra.mxu0 0
        %729 = vmatprep.mubr.bf16.mxu0 0
        %730 = vmatmul.mubr.bf16.gmra.mxu0 %v695
        %v731 = vpop.f32.mrf.mxu0
        %v732 = vadd.f32 %v680, %v731
        %v733 = vpop.f32.mrf.mxu0
        %v734 = vpop.f32.mrf.mxu0
        %v735 = vadd.f32 %v680, %v734
        %v736 = vpop.f32.mrf.mxu0
        %737 = vdwg.mxu0
        %v738 = vpack.c.bf16 %v735, %v732
        %740 = vrot.lane.b32.xlu0 %v738, 96
        %v741 = vpop.permute.xlu0 %740
        %vm742 = vcmask 64512
        %v744 = vsel %vm742, %v738, 0
        %v747 = vsel %vm742, %v741, 0
        %749 = vmatprep.subr.bf16.mxu0 0
        %750 = vmatpush1.bf16.xpose.msra.mxu0 0
        %751 = vmatprep.subr.bf16.mxu0 0
        %752 = vmatpush1.bf16.xpose.msra.mxu0 0
        %753 = vmatprep.subr.bf16.mxu0 0
        %754 = vmatpush1.bf16.xpose.msra.mxu0 0
        %755 = vmatprep.subr.bf16.mxu0 0
        %756 = vmatpush1.bf16.xpose.msra.mxu0 0
        %757 = vmatprep.subr.bf16.mxu0 0
        %758 = vmatpush1.bf16.xpose.msra.mxu0 0
        %759 = vmatprep.subr.bf16.mxu0 0
        %760 = vmatpush1.bf16.xpose.msra.mxu0 0
        %761 = vmatprep.subr.bf16.mxu0 0
        %762 = vmatpush1.bf16.xpose.msra.mxu0 0
        %763 = vmatprep.subr.bf16.mxu0 0
        %764 = vmatpush1.bf16.xpose.msra.mxu0 %v747
        %765 = vmatprep.subr.bf16.mxu0 0
        %766 = vmatpush2.bf16.xpose.msra.mxu0 0
        %767 = vmatprep.subr.bf16.mxu0 0
        %768 = vmatpush2.bf16.xpose.msra.mxu0 0
        %769 = vmatprep.subr.bf16.mxu0 0
        %770 = vmatpush2.bf16.xpose.msra.mxu0 0
        %771 = vmatprep.subr.bf16.mxu0 0
        %772 = vmatpush2.bf16.xpose.msra.mxu0 0
        %773 = vmatprep.subr.bf16.mxu0 0
        %774 = vmatpush2.bf16.xpose.msra.mxu0 0
        %775 = vmatprep.subr.bf16.mxu0 0
        %776 = vmatpush2.bf16.xpose.msra.mxu0 0
        %777 = vmatprep.subr.bf16.mxu0 0
        %778 = vmatpush2.bf16.xpose.msra.mxu0 0
        %779 = vmatprep.subr.bf16.mxu0 0
        %780 = vmatpush2.bf16.xpose.msra.mxu0 0
        %781 = vmatprep.mubr.bf16.mxu0 0
        %782 = vmatmul.mubr.bf16.gmra.mxu0 %v744
        %v783 = vpop.f32.mrf.mxu0
        %v784 = vadd.f32 0.0, %v783
        %v785 = vpop.f32.mrf.mxu0
        %v786 = vpop.f32.mrf.mxu0
        %v787 = vpop.f32.mrf.mxu0
        %788 = vdwg.mxu0
        %v789 = vmul.f32 %v784, 0.35355338
        %v791 = vlaneseq
        %v792 = vshrl.u32 %v791, 7
        %v793 = vsub.s32 0, %v792
        %v794 = vrot.slane %v607, %v793
        %v796 = vadd.f32 %v789, %v794
        %v797 = vsel %vm742, %v796, -inf
        %798 = vmax.xlane.f32.xlu0 %v797
        %v799 = vpop.xlane.xlu0 %798
        %v800 = vsub.f32 %v796, %v799
        %v801 = vmul.f32 %v800, 1.442695
        %v802 = vpow.pop %v801
        %v803 = vsel %vm742, %v802, 0.0
        %804 = vadd.xlane.f32.xlu0 %v803
        %v805 = vpop.xlane.xlu0 %804
        %v806 = vrcp.pop %v805
        %v807 = vmul.f32 %v802, %v806
        %v808 = vpack.c.bf16 %v807, %v807
        %809 = vrot.lane.b32.xlu0 %v738, 64
        %v810 = vpop.permute.xlu0 %809
        %v812 = vsel %vm742, %v808, 0
        %vm814 = vcmask 1043456
        %v816 = vsel %vm814, %v810, 0
        %818 = vmatprep.subr.bf16.mxu0 0
        %819 = vmatpush1.bf16.msra.mxu0 0
        %820 = vmatprep.subr.bf16.mxu0 0
        %821 = vmatpush1.bf16.msra.mxu0 0
        %822 = vmatprep.subr.bf16.mxu0 0
        %823 = vmatpush1.bf16.msra.mxu0 0
        %824 = vmatprep.subr.bf16.mxu0 0
        %825 = vmatpush1.bf16.msra.mxu0 0
        %826 = vmatprep.subr.bf16.mxu0 0
        %827 = vmatpush1.bf16.msra.mxu0 0
        %828 = vmatprep.subr.bf16.mxu0 0
        %829 = vmatpush1.bf16.msra.mxu0 0
        %830 = vmatprep.subr.bf16.mxu0 0
        %831 = vmatpush1.bf16.msra.mxu0 0
        %832 = vmatprep.subr.bf16.mxu0 0
        %833 = vmatpush1.bf16.msra.mxu0 %v816
        %834 = vmatprep.subr.bf16.mxu0 0
        %835 = vmatpush2.bf16.msra.mxu0 0
        %836 = vmatprep.subr.bf16.mxu0 0
        %837 = vmatpush2.bf16.msra.mxu0 0
        %838 = vmatprep.subr.bf16.mxu0 0
        %839 = vmatpush2.bf16.msra.mxu0 0
        %840 = vmatprep.subr.bf16.mxu0 0
        %841 = vmatpush2.bf16.msra.mxu0 0
        %842 = vmatprep.subr.bf16.mxu0 0
        %843 = vmatpush2.bf16.msra.mxu0 0
        %844 = vmatprep.subr.bf16.mxu0 0
        %845 = vmatpush2.bf16.msra.mxu0 0
        %846 = vmatprep.subr.bf16.mxu0 0
        %847 = vmatpush2.bf16.msra.mxu0 0
        %848 = vmatprep.subr.bf16.mxu0 0
        %849 = vmatpush2.bf16.msra.mxu0 0
        %850 = vmatprep.mubr.bf16.mxu0 0
        %851 = vmatmul.mubr.bf16.gmra.mxu0 %v812
        %v852 = vpop.f32.mrf.mxu0
        %v853 = vadd.f32 0.0, %v852
        %v854 = vpop.f32.mrf.mxu0
        %v855 = vpop.f32.mrf.mxu0
        %v856 = vpop.f32.mrf.mxu0
        %857 = vdwg.mxu0
        %858 = vrot.lane.b32.xlu0 %v738, 120
        %v859 = vpop.permute.xlu0 %858
        %860 = vrot.lane.b32.xlu0 %v738, 88
        %v861 = vpop.permute.xlu0 %860
        %v863 = vsel %vm742, %v859, 0
        %v866 = vsel %vm742, %v861, 0
        %868 = vmatprep.subr.bf16.mxu0 0
        %869 = vmatpush1.bf16.xpose.msra.mxu0 0
        %870 = vmatprep.subr.bf16.mxu0 0
        %871 = vmatpush1.bf16.xpose.msra.mxu0 0
        %872 = vmatprep.subr.bf16.mxu0 0
        %873 = vmatpush1.bf16.xpose.msra.mxu0 0
        %874 = vmatprep.subr.bf16.mxu0 0
        %875 = vmatpush1.bf16.xpose.msra.mxu0 0
        %876 = vmatprep.subr.bf16.mxu0 0
        %877 = vmatpush1.bf16.xpose.msra.mxu0 0
        %878 = vmatprep.subr.bf16.mxu0 0
        %879 = vmatpush1.bf16.xpose.msra.mxu0 0
        %880 = vmatprep.subr.bf16.mxu0 0
        %881 = vmatpush1.bf16.xpose.msra.mxu0 0
        %882 = vmatprep.subr.bf16.mxu0 0
        %883 = vmatpush1.bf16.xpose.msra.mxu0 %v866
        %884 = vmatprep.subr.bf16.mxu0 0
        %885 = vmatpush2.bf16.xpose.msra.mxu0 0
        %886 = vmatprep.subr.bf16.mxu0 0
        %887 = vmatpush2.bf16.xpose.msra.mxu0 0
        %888 = vmatprep.subr.bf16.mxu0 0
        %889 = vmatpush2.bf16.xpose.msra.mxu0 0
        %890 = vmatprep.subr.bf16.mxu0 0
        %891 = vmatpush2.bf16.xpose.msra.mxu0 0
        %892 = vmatprep.subr.bf16.mxu0 0
        %893 = vmatpush2.bf16.xpose.msra.mxu0 0
        %894 = vmatprep.subr.bf16.mxu0 0
        %895 = vmatpush2.bf16.xpose.msra.mxu0 0
        %896 = vmatprep.subr.bf16.mxu0 0
        %897 = vmatpush2.bf16.xpose.msra.mxu0 0
        %898 = vmatprep.subr.bf16.mxu0 0
        %899 = vmatpush2.bf16.xpose.msra.mxu0 0
        %900 = vmatprep.mubr.bf16.mxu0 0
        %901 = vmatmul.mubr.bf16.gmra.mxu0 %v863
        %v902 = vpop.f32.mrf.mxu0
        %v903 = vadd.f32 0.0, %v902
        %v904 = vpop.f32.mrf.mxu0
        %v905 = vpop.f32.mrf.mxu0
        %v906 = vpop.f32.mrf.mxu0
        %907 = vdwg.mxu0
        %v908 = vmul.f32 %v903, 0.35355338
        %v909 = vadd.f32 %v908, %v794
        %v910 = vsel %vm742, %v909, -inf
        %911 = vmax.xlane.f32.xlu0 %v910
        %v912 = vpop.xlane.xlu0 %911
        %v913 = vsub.f32 %v909, %v912
        %v914 = vmul.f32 %v913, 1.442695
        %v915 = vpow.pop %v914
        %v916 = vsel %vm742, %v915, 0.0
        %917 = vadd.xlane.f32.xlu0 %v916
        %v918 = vpop.xlane.xlu0 %917
        %v919 = vrcp.pop %v918
        %v920 = vmul.f32 %v915, %v919
        %v921 = vpack.c.bf16 %v920, %v920
        %922 = vrot.lane.b32.xlu0 %v738, 56
        %v923 = vpop.permute.xlu0 %922
        %v925 = vsel %vm742, %v921, 0
        %v928 = vsel %vm814, %v923, 0
        %930 = vmatprep.subr.bf16.mxu0 0
        %931 = vmatpush1.bf16.msra.mxu0 0
        %932 = vmatprep.subr.bf16.mxu0 0
        %933 = vmatpush1.bf16.msra.mxu0 0
        %934 = vmatprep.subr.bf16.mxu0 0
        %935 = vmatpush1.bf16.msra.mxu0 0
        %936 = vmatprep.subr.bf16.mxu0 0
        %937 = vmatpush1.bf16.msra.mxu0 0
        %938 = vmatprep.subr.bf16.mxu0 0
        %939 = vmatpush1.bf16.msra.mxu0 0
        %940 = vmatprep.subr.bf16.mxu0 0
        %941 = vmatpush1.bf16.msra.mxu0 0
        %942 = vmatprep.subr.bf16.mxu0 0
        %943 = vmatpush1.bf16.msra.mxu0 0
        %944 = vmatprep.subr.bf16.mxu0 0
        %945 = vmatpush1.bf16.msra.mxu0 %v928
        %946 = vmatprep.subr.bf16.mxu0 0
        %947 = vmatpush2.bf16.msra.mxu0 0
        %948 = vmatprep.subr.bf16.mxu0 0
        %949 = vmatpush2.bf16.msra.mxu0 0
        %950 = vmatprep.subr.bf16.mxu0 0
        %951 = vmatpush2.bf16.msra.mxu0 0
        %952 = vmatprep.subr.bf16.mxu0 0
        %953 = vmatpush2.bf16.msra.mxu0 0
        %954 = vmatprep.subr.bf16.mxu0 0
        %955 = vmatpush2.bf16.msra.mxu0 0
        %956 = vmatprep.subr.bf16.mxu0 0
        %957 = vmatpush2.bf16.msra.mxu0 0
        %958 = vmatprep.subr.bf16.mxu0 0
        %959 = vmatpush2.bf16.msra.mxu0 0
        %960 = vmatprep.subr.bf16.mxu0 0
        %961 = vmatpush2.bf16.msra.mxu0 0
        %962 = vmatprep.mubr.bf16.mxu0 0
        %963 = vmatmul.mubr.bf16.gmra.mxu0 %v925
        %v964 = vpop.f32.mrf.mxu0
        %v965 = vadd.f32 0.0, %v964
        %v966 = vpop.f32.mrf.mxu0
        %v967 = vpop.f32.mrf.mxu0
        %v968 = vpop.f32.mrf.mxu0
        %969 = vdwg.mxu0
        %970 = vrot.lane.b32.xlu0 %v738, 112
        %v971 = vpop.permute.xlu0 %970
        %972 = vrot.lane.b32.xlu0 %v738, 80
        %v973 = vpop.permute.xlu0 %972
        %v975 = vsel %vm742, %v971, 0
        %v978 = vsel %vm742, %v973, 0
        %980 = vmatprep.subr.bf16.mxu0 0
        %981 = vmatpush1.bf16.xpose.msra.mxu0 0
        %982 = vmatprep.subr.bf16.mxu0 0
        %983 = vmatpush1.bf16.xpose.msra.mxu0 0
        %984 = vmatprep.subr.bf16.mxu0 0
        %985 = vmatpush1.bf16.xpose.msra.mxu0 0
        %986 = vmatprep.subr.bf16.mxu0 0
        %987 = vmatpush1.bf16.xpose.msra.mxu0 0
        %988 = vmatprep.subr.bf16.mxu0 0
        %989 = vmatpush1.bf16.xpose.msra.mxu0 0
        %990 = vmatprep.subr.bf16.mxu0 0
        %991 = vmatpush1.bf16.xpose.msra.mxu0 0
        %992 = vmatprep.subr.bf16.mxu0 0
        %993 = vmatpush1.bf16.xpose.msra.mxu0 0
        %994 = vmatprep.subr.bf16.mxu0 0
        %995 = vmatpush1.bf16.xpose.msra.mxu0 %v978
        %996 = vmatprep.subr.bf16.mxu0 0
        %997 = vmatpush2.bf16.xpose.msra.mxu0 0
        %998 = vmatprep.subr.bf16.mxu0 0
        %999 = vmatpush2.bf16.xpose.msra.mxu0 0
        %1000 = vmatprep.subr.bf16.mxu0 0
        %1001 = vmatpush2.bf16.xpose.msra.mxu0 0
        %1002 = vmatprep.subr.bf16.mxu0 0
        %1003 = vmatpush2.bf16.xpose.msra.mxu0 0
        %1004 = vmatprep.subr.bf16.mxu0 0
        %1005 = vmatpush2.bf16.xpose.msra.mxu0 0
        %1006 = vmatprep.subr.bf16.mxu0 0
        %1007 = vmatpush2.bf16.xpose.msra.mxu0 0
        %1008 = vmatprep.subr.bf16.mxu0 0
        %1009 = vmatpush2.bf16.xpose.msra.mxu0 0
        %1010 = vmatprep.subr.bf16.mxu0 0
        %1011 = vmatpush2.bf16.xpose.msra.mxu0 0
        %1012 = vmatprep.mubr.bf16.mxu0 0
        %1013 = vmatmul.mubr.bf16.gmra.mxu0 %v975
        %v1014 = vpop.f32.mrf.mxu0
        %v1015 = vadd.f32 0.0, %v1014
        %v1016 = vpop.f32.mrf.mxu0
        %v1017 = vpop.f32.mrf.mxu0
        %v1018 = vpop.f32.mrf.mxu0
        %1019 = vdwg.mxu0
        %v1020 = vmul.f32 %v1015, 0.35355338
        %v1021 = vadd.f32 %v1020, %v794
        %v1022 = vsel %vm742, %v1021, -inf
        %1023 = vmax.xlane.f32.xlu0 %v1022
        %v1024 = vpop.xlane.xlu0 %1023
        %v1025 = vsub.f32 %v1021, %v1024
        %v1026 = vmul.f32 %v1025, 1.442695
        %v1027 = vpow.pop %v1026
        %v1028 = vsel %vm742, %v1027, 0.0
        %1029 = vadd.xlane.f32.xlu0 %v1028
        %v1030 = vpop.xlane.xlu0 %1029
        %v1031 = vrcp.pop %v1030
        %v1032 = vmul.f32 %v1027, %v1031
        %v1033 = vpack.c.bf16 %v1032, %v1032
        %1034 = vrot.lane.b32.xlu0 %v738, 48
        %v1035 = vpop.permute.xlu0 %1034
        %v1037 = vsel %vm742, %v1033, 0
        %v1040 = vsel %vm814, %v1035, 0
        %1042 = vmatprep.subr.bf16.mxu0 0
        %1043 = vmatpush1.bf16.msra.mxu0 0
        %1044 = vmatprep.subr.bf16.mxu0 0
        %1045 = vmatpush1.bf16.msra.mxu0 0
        %1046 = vmatprep.subr.bf16.mxu0 0
        %1047 = vmatpush1.bf16.msra.mxu0 0
        %1048 = vmatprep.subr.bf16.mxu0 0
        %1049 = vmatpush1.bf16.msra.mxu0 0
        %1050 = vmatprep.subr.bf16.mxu0 0
        %1051 = vmatpush1.bf16.msra.mxu0 0
        %1052 = vmatprep.subr.bf16.mxu0 0
        %1053 = vmatpush1.bf16.msra.mxu0 0
        %1054 = vmatprep.subr.bf16.mxu0 0
        %1055 = vmatpush1.bf16.msra.mxu0 0
        %1056 = vmatprep.subr.bf16.mxu0 0
        %1057 = vmatpush1.bf16.msra.mxu0 %v1040
        %1058 = vmatprep.subr.bf16.mxu0 0
        %1059 = vmatpush2.bf16.msra.mxu0 0
        %1060 = vmatprep.subr.bf16.mxu0 0
        %1061 = vmatpush2.bf16.msra.mxu0 0
        %1062 = vmatprep.subr.bf16.mxu0 0
        %1063 = vmatpush2.bf16.msra.mxu0 0
        %1064 = vmatprep.subr.bf16.mxu0 0
        %1065 = vmatpush2.bf16.msra.mxu0 0
        %1066 = vmatprep.subr.bf16.mxu0 0
        %1067 = vmatpush2.bf16.msra.mxu0 0
        %1068 = vmatprep.subr.bf16.mxu0 0
        %1069 = vmatpush2.bf16.msra.mxu0 0
        %1070 = vmatprep.subr.bf16.mxu0 0
        %1071 = vmatpush2.bf16.msra.mxu0 0
        %1072 = vmatprep.subr.bf16.mxu0 0
        %1073 = vmatpush2.bf16.msra.mxu0 0
        %1074 = vmatprep.mubr.bf16.mxu0 0
        %1075 = vmatmul.mubr.bf16.gmra.mxu0 %v1037
        %v1076 = vpop.f32.mrf.mxu0
        %v1077 = vadd.f32 0.0, %v1076
        %v1078 = vpop.f32.mrf.mxu0
        %v1079 = vpop.f32.mrf.mxu0
        %v1080 = vpop.f32.mrf.mxu0
        %1081 = vdwg.mxu0
        %1082 = vrot.lane.b32.xlu0 %v738, 104
        %v1083 = vpop.permute.xlu0 %1082
        %1084 = vrot.lane.b32.xlu0 %v738, 72
        %v1085 = vpop.permute.xlu0 %1084
        %v1087 = vsel %vm742, %v1083, 0
        %v1090 = vsel %vm742, %v1085, 0
        %1092 = vmatprep.subr.bf16.mxu0 0
        %1093 = vmatpush1.bf16.xpose.msra.mxu0 0
        %1094 = vmatprep.subr.bf16.mxu0 0
        %1095 = vmatpush1.bf16.xpose.msra.mxu0 0
        %1096 = vmatprep.subr.bf16.mxu0 0
        %1097 = vmatpush1.bf16.xpose.msra.mxu0 0
        %1098 = vmatprep.subr.bf16.mxu0 0
        %1099 = vmatpush1.bf16.xpose.msra.mxu0 0
        %1100 = vmatprep.subr.bf16.mxu0 0
        %1101 = vmatpush1.bf16.xpose.msra.mxu0 0
        %1102 = vmatprep.subr.bf16.mxu0 0
        %1103 = vmatpush1.bf16.xpose.msra.mxu0 0
        %1104 = vmatprep.subr.bf16.mxu0 0
        %1105 = vmatpush1.bf16.xpose.msra.mxu0 0
        %1106 = vmatprep.subr.bf16.mxu0 0
        %1107 = vmatpush1.bf16.xpose.msra.mxu0 %v1090
        %1108 = vmatprep.subr.bf16.mxu0 0
        %1109 = vmatpush2.bf16.xpose.msra.mxu0 0
        %1110 = vmatprep.subr.bf16.mxu0 0
        %1111 = vmatpush2.bf16.xpose.msra.mxu0 0
        %1112 = vmatprep.subr.bf16.mxu0 0
        %1113 = vmatpush2.bf16.xpose.msra.mxu0 0
        %1114 = vmatprep.subr.bf16.mxu0 0
        %1115 = vmatpush2.bf16.xpose.msra.mxu0 0
        %1116 = vmatprep.subr.bf16.mxu0 0
        %1117 = vmatpush2.bf16.xpose.msra.mxu0 0
        %1118 = vmatprep.subr.bf16.mxu0 0
        %1119 = vmatpush2.bf16.xpose.msra.mxu0 0
        %1120 = vmatprep.subr.bf16.mxu0 0
        %1121 = vmatpush2.bf16.xpose.msra.mxu0 0
        %1122 = vmatprep.subr.bf16.mxu0 0
        %1123 = vmatpush2.bf16.xpose.msra.mxu0 0
        %1124 = vmatprep.mubr.bf16.mxu0 0
        %1125 = vmatmul.mubr.bf16.gmra.mxu0 %v1087
        %v1126 = vpop.f32.mrf.mxu0
        %v1127 = vadd.f32 0.0, %v1126
        %v1128 = vpop.f32.mrf.mxu0
        %v1129 = vpop.f32.mrf.mxu0
        %v1130 = vpop.f32.mrf.mxu0
        %1131 = vdwg.mxu0
        %v1132 = vmul.f32 %v1127, 0.35355338
        %v1133 = vadd.f32 %v1132, %v794
        %v1134 = vsel %vm742, %v1133, -inf
        %1135 = vmax.xlane.f32.xlu0 %v1134
        %v1136 = vpop.xlane.xlu0 %1135
        %v1137 = vsub.f32 %v1133, %v1136
        %v1138 = vmul.f32 %v1137, 1.442695
        %v1139 = vpow.pop %v1138
        %v1140 = vsel %vm742, %v1139, 0.0
        %1141 = vadd.xlane.f32.xlu0 %v1140
        %v1142 = vpop.xlane.xlu0 %1141
        %v1143 = vrcp.pop %v1142
        %v1144 = vmul.f32 %v1139, %v1143
        %v1145 = vpack.c.bf16 %v1144, %v1144
        %1146 = vrot.lane.b32.xlu0 %v738, 40
        %v1147 = vpop.permute.xlu0 %1146
        %v1149 = vsel %vm742, %v1145, 0
        %v1152 = vsel %vm814, %v1147, 0
        %1154 = vmatprep.subr.bf16.mxu0 0
        %1155 = vmatpush1.bf16.msra.mxu0 0
        %1156 = vmatprep.subr.bf16.mxu0 0
        %1157 = vmatpush1.bf16.msra.mxu0 0
        %1158 = vmatprep.subr.bf16.mxu0 0
        %1159 = vmatpush1.bf16.msra.mxu0 0
        %1160 = vmatprep.subr.bf16.mxu0 0
        %1161 = vmatpush1.bf16.msra.mxu0 0
        %1162 = vmatprep.subr.bf16.mxu0 0
        %1163 = vmatpush1.bf16.msra.mxu0 0
        %1164 = vmatprep.subr.bf16.mxu0 0
        %1165 = vmatpush1.bf16.msra.mxu0 0
        %1166 = vmatprep.subr.bf16.mxu0 0
        %1167 = vmatpush1.bf16.msra.mxu0 0
        %1168 = vmatprep.subr.bf16.mxu0 0
        %1169 = vmatpush1.bf16.msra.mxu0 %v1152
        %1170 = vmatprep.subr.bf16.mxu0 0
        %1171 = vmatpush2.bf16.msra.mxu0 0
        %1172 = vmatprep.subr.bf16.mxu0 0
        %1173 = vmatpush2.bf16.msra.mxu0 0
        %1174 = vmatprep.subr.bf16.mxu0 0
        %1175 = vmatpush2.bf16.msra.mxu0 0
        %1176 = vmatprep.subr.bf16.mxu0 0
        %1177 = vmatpush2.bf16.msra.mxu0 0
        %1178 = vmatprep.subr.bf16.mxu0 0
        %1179 = vmatpush2.bf16.msra.mxu0 0
        %1180 = vmatprep.subr.bf16.mxu0 0
        %1181 = vmatpush2.bf16.msra.mxu0 0
        %1182 = vmatprep.subr.bf16.mxu0 0
        %1183 = vmatpush2.bf16.msra.mxu0 0
        %1184 = vmatprep.subr.bf16.mxu0 0
        %1185 = vmatpush2.bf16.msra.mxu0 0
        %1186 = vmatprep.mubr.bf16.mxu0 0
        %1187 = vmatmul.mubr.bf16.gmra.mxu0 %v1149
        %v1188 = vpop.f32.mrf.mxu0
        %v1189 = vadd.f32 0.0, %v1188
        %v1190 = vpop.f32.mrf.mxu0
        %v1191 = vpop.f32.mrf.mxu0
        %v1192 = vpop.f32.mrf.mxu0
        %1193 = vdwg.mxu0
        %1195 = vrot.lane.b32.xlu0 %v965, 8
        %v1196 = vpop.permute.xlu0 %1195
        %1199 = vrot.lane.b32.xlu0 %v1077, 16
        %v1200 = vpop.permute.xlu0 %1199
        %1203 = vrot.lane.b32.xlu0 %v1189, 24
        %v1204 = vpop.permute.xlu0 %1203
        %v1206 = vsel %vm742, %v853, %v1196
        %vm1207 = vcmask 130048
        %v1208 = vsel %vm1207, %v1206, %v1200
        %vm1209 = vcmask 195584
        %v1210 = vsel %vm1209, %v1208, %v1204
        %v1211 = vrot.slane %v738, 4
        %1212 = vrot.lane.b32.xlu0 %v1211, 96
        %v1213 = vpop.permute.xlu0 %1212
        %v1215 = vsel %vm742, %v1211, 0
        %v1218 = vsel %vm742, %v1213, 0
        %1220 = vmatprep.subr.bf16.mxu0 0
        %1221 = vmatpush1.bf16.xpose.msra.mxu0 0
        %1222 = vmatprep.subr.bf16.mxu0 0
        %1223 = vmatpush1.bf16.xpose.msra.mxu0 0
        %1224 = vmatprep.subr.bf16.mxu0 0
        %1225 = vmatpush1.bf16.xpose.msra.mxu0 0
        %1226 = vmatprep.subr.bf16.mxu0 0
        %1227 = vmatpush1.bf16.xpose.msra.mxu0 0
        %1228 = vmatprep.subr.bf16.mxu0 0
        %1229 = vmatpush1.bf16.xpose.msra.mxu0 0
        %1230 = vmatprep.subr.bf16.mxu0 0
        %1231 = vmatpush1.bf16.xpose.msra.mxu0 0
        %1232 = vmatprep.subr.bf16.mxu0 0
        %1233 = vmatpush1.bf16.xpose.msra.mxu0 0
        %1234 = vmatprep.subr.bf16.mxu0 0
        %1235 = vmatpush1.bf16.xpose.msra.mxu0 %v1218
        %1236 = vmatprep.subr.bf16.mxu0 0
        %1237 = vmatpush2.bf16.xpose.msra.mxu0 0
        %1238 = vmatprep.subr.bf16.mxu0 0
        %1239 = vmatpush2.bf16.xpose.msra.mxu0 0
        %1240 = vmatprep.subr.bf16.mxu0 0
        %1241 = vmatpush2.bf16.xpose.msra.mxu0 0
        %1242 = vmatprep.subr.bf16.mxu0 0
        %1243 = vmatpush2.bf16.xpose.msra.mxu0 0
        %1244 = vmatprep.subr.bf16.mxu0 0
        %1245 = vmatpush2.bf16.xpose.msra.mxu0 0
        %1246 = vmatprep.subr.bf16.mxu0 0
        %1247 = vmatpush2.bf16.xpose.msra.mxu0 0
        %1248 = vmatprep.subr.bf16.mxu0 0
        %1249 = vmatpush2.bf16.xpose.msra.mxu0 0
        %1250 = vmatprep.subr.bf16.mxu0 0
        %1251 = vmatpush2.bf16.xpose.msra.mxu0 0
        %1252 = vmatprep.mubr.bf16.mxu0 0
        %1253 = vmatmul.mubr.bf16.gmra.mxu0 %v1215
        %v1254 = vpop.f32.mrf.mxu0
        %v1255 = vadd.f32 0.0, %v1254
        %v1256 = vpop.f32.mrf.mxu0
        %v1257 = vpop.f32.mrf.mxu0
        %v1258 = vpop.f32.mrf.mxu0
        %1259 = vdwg.mxu0
        %v1260 = vmul.f32 %v1255, 0.35355338
        %v1262 = vlaneseq
        %v1263 = vshrl.u32 %v1262, 7
        %v1264 = vsub.s32 0, %v1263
        %v1265 = vrot.slane %v608, %v1264
        %v1267 = vadd.f32 %v1260, %v1265
        %v1268 = vsel %vm742, %v1267, -inf
        %1269 = vmax.xlane.f32.xlu0 %v1268
        %v1270 = vpop.xlane.xlu0 %1269
        %v1271 = vsub.f32 %v1267, %v1270
        %v1272 = vmul.f32 %v1271, 1.442695
        %v1273 = vpow.pop %v1272
        %v1274 = vsel %vm742, %v1273, 0.0
        %1275 = vadd.xlane.f32.xlu0 %v1274
        %v1276 = vpop.xlane.xlu0 %1275
        %v1277 = vrcp.pop %v1276
        %v1278 = vmul.f32 %v1273, %v1277
        %v1279 = vpack.c.bf16 %v1278, %v1278
        %1280 = vrot.lane.b32.xlu0 %v1211, 64
        %v1281 = vpop.permute.xlu0 %1280
        %v1283 = vsel %vm742, %v1279, 0
        %v1286 = vsel %vm814, %v1281, 0
        %1288 = vmatprep.subr.bf16.mxu0 0
        %1289 = vmatpush1.bf16.msra.mxu0 0
        %1290 = vmatprep.subr.bf16.mxu0 0
        %1291 = vmatpush1.bf16.msra.mxu0 0
        %1292 = vmatprep.subr.bf16.mxu0 0
        %1293 = vmatpush1.bf16.msra.mxu0 0
        %1294 = vmatprep.subr.bf16.mxu0 0
        %1295 = vmatpush1.bf16.msra.mxu0 0
        %1296 = vmatprep.subr.bf16.mxu0 0
        %1297 = vmatpush1.bf16.msra.mxu0 0
        %1298 = vmatprep.subr.bf16.mxu0 0
        %1299 = vmatpush1.bf16.msra.mxu0 0
        %1300 = vmatprep.subr.bf16.mxu0 0
        %1301 = vmatpush1.bf16.msra.mxu0 0
        %1302 = vmatprep.subr.bf16.mxu0 0
        %1303 = vmatpush1.bf16.msra.mxu0 %v1286
        %1304 = vmatprep.subr.bf16.mxu0 0
        %1305 = vmatpush2.bf16.msra.mxu0 0
        %1306 = vmatprep.subr.bf16.mxu0 0
        %1307 = vmatpush2.bf16.msra.mxu0 0
        %1308 = vmatprep.subr.bf16.mxu0 0
        %1309 = vmatpush2.bf16.msra.mxu0 0
        %1310 = vmatprep.subr.bf16.mxu0 0
        %1311 = vmatpush2.bf16.msra.mxu0 0
        %1312 = vmatprep.subr.bf16.mxu0 0
        %1313 = vmatpush2.bf16.msra.mxu0 0
        %1314 = vmatprep.subr.bf16.mxu0 0
        %1315 = vmatpush2.bf16.msra.mxu0 0
        %1316 = vmatprep.subr.bf16.mxu0 0
        %1317 = vmatpush2.bf16.msra.mxu0 0
        %1318 = vmatprep.subr.bf16.mxu0 0
        %1319 = vmatpush2.bf16.msra.mxu0 0
        %1320 = vmatprep.mubr.bf16.mxu0 0
        %1321 = vmatmul.mubr.bf16.gmra.mxu0 %v1283
        %v1322 = vpop.f32.mrf.mxu0
        %v1323 = vadd.f32 0.0, %v1322
        %v1324 = vpop.f32.mrf.mxu0
        %v1325 = vpop.f32.mrf.mxu0
        %v1326 = vpop.f32.mrf.mxu0
        %1327 = vdwg.mxu0
        %1328 = vrot.lane.b32.xlu0 %v1211, 120
        %v1329 = vpop.permute.xlu0 %1328
        %1330 = vrot.lane.b32.xlu0 %v1211, 88
        %v1331 = vpop.permute.xlu0 %1330
        %v1333 = vsel %vm742, %v1329, 0
        %v1336 = vsel %vm742, %v1331, 0
        %1338 = vmatprep.subr.bf16.mxu0 0
        %1339 = vmatpush1.bf16.xpose.msra.mxu0 0
        %1340 = vmatprep.subr.bf16.mxu0 0
        %1341 = vmatpush1.bf16.xpose.msra.mxu0 0
        %1342 = vmatprep.subr.bf16.mxu0 0
        %1343 = vmatpush1.bf16.xpose.msra.mxu0 0
        %1344 = vmatprep.subr.bf16.mxu0 0
        %1345 = vmatpush1.bf16.xpose.msra.mxu0 0
        %1346 = vmatprep.subr.bf16.mxu0 0
        %1347 = vmatpush1.bf16.xpose.msra.mxu0 0
        %1348 = vmatprep.subr.bf16.mxu0 0
        %1349 = vmatpush1.bf16.xpose.msra.mxu0 0
        %1350 = vmatprep.subr.bf16.mxu0 0
        %1351 = vmatpush1.bf16.xpose.msra.mxu0 0
        %1352 = vmatprep.subr.bf16.mxu0 0
        %1353 = vmatpush1.bf16.xpose.msra.mxu0 %v1336
        %1354 = vmatprep.subr.bf16.mxu0 0
        %1355 = vmatpush2.bf16.xpose.msra.mxu0 0
        %1356 = vmatprep.subr.bf16.mxu0 0
        %1357 = vmatpush2.bf16.xpose.msra.mxu0 0
        %1358 = vmatprep.subr.bf16.mxu0 0
        %1359 = vmatpush2.bf16.xpose.msra.mxu0 0
        %1360 = vmatprep.subr.bf16.mxu0 0
        %1361 = vmatpush2.bf16.xpose.msra.mxu0 0
        %1362 = vmatprep.subr.bf16.mxu0 0
        %1363 = vmatpush2.bf16.xpose.msra.mxu0 0
        %1364 = vmatprep.subr.bf16.mxu0 0
        %1365 = vmatpush2.bf16.xpose.msra.mxu0 0
        %1366 = vmatprep.subr.bf16.mxu0 0
        %1367 = vmatpush2.bf16.xpose.msra.mxu0 0
        %1368 = vmatprep.subr.bf16.mxu0 0
        %1369 = vmatpush2.bf16.xpose.msra.mxu0 0
        %1370 = vmatprep.mubr.bf16.mxu0 0
        %1371 = vmatmul.mubr.bf16.gmra.mxu0 %v1333
        %v1372 = vpop.f32.mrf.mxu0
        %v1373 = vadd.f32 0.0, %v1372
        %v1374 = vpop.f32.mrf.mxu0
        %v1375 = vpop.f32.mrf.mxu0
        %v1376 = vpop.f32.mrf.mxu0
        %1377 = vdwg.mxu0
        %v1378 = vmul.f32 %v1373, 0.35355338
        %v1379 = vadd.f32 %v1378, %v1265
        %v1380 = vsel %vm742, %v1379, -inf
        %1381 = vmax.xlane.f32.xlu0 %v1380
        %v1382 = vpop.xlane.xlu0 %1381
        %v1383 = vsub.f32 %v1379, %v1382
        %v1384 = vmul.f32 %v1383, 1.442695
        %v1385 = vpow.pop %v1384
        %v1386 = vsel %vm742, %v1385, 0.0
        %1387 = vadd.xlane.f32.xlu0 %v1386
        %v1388 = vpop.xlane.xlu0 %1387
        %v1389 = vrcp.pop %v1388
        %v1390 = vmul.f32 %v1385, %v1389
        %v1391 = vpack.c.bf16 %v1390, %v1390
        %1392 = vrot.lane.b32.xlu0 %v1211, 56
        %v1393 = vpop.permute.xlu0 %1392
        %v1395 = vsel %vm742, %v1391, 0
        %v1398 = vsel %vm814, %v1393, 0
        %1400 = vmatprep.subr.bf16.mxu0 0
        %1401 = vmatpush1.bf16.msra.mxu0 0
        %1402 = vmatprep.subr.bf16.mxu0 0
        %1403 = vmatpush1.bf16.msra.mxu0 0
        %1404 = vmatprep.subr.bf16.mxu0 0
        %1405 = vmatpush1.bf16.msra.mxu0 0
        %1406 = vmatprep.subr.bf16.mxu0 0
        %1407 = vmatpush1.bf16.msra.mxu0 0
        %1408 = vmatprep.subr.bf16.mxu0 0
        %1409 = vmatpush1.bf16.msra.mxu0 0
        %1410 = vmatprep.subr.bf16.mxu0 0
        %1411 = vmatpush1.bf16.msra.mxu0 0
        %1412 = vmatprep.subr.bf16.mxu0 0
        %1413 = vmatpush1.bf16.msra.mxu0 0
        %1414 = vmatprep.subr.bf16.mxu0 0
        %1415 = vmatpush1.bf16.msra.mxu0 %v1398
        %1416 = vmatprep.subr.bf16.mxu0 0
        %1417 = vmatpush2.bf16.msra.mxu0 0
        %1418 = vmatprep.subr.bf16.mxu0 0
        %1419 = vmatpush2.bf16.msra.mxu0 0
        %1420 = vmatprep.subr.bf16.mxu0 0
        %1421 = vmatpush2.bf16.msra.mxu0 0
        %1422 = vmatprep.subr.bf16.mxu0 0
        %1423 = vmatpush2.bf16.msra.mxu0 0
        %1424 = vmatprep.subr.bf16.mxu0 0
        %1425 = vmatpush2.bf16.msra.mxu0 0
        %1426 = vmatprep.subr.bf16.mxu0 0
        %1427 = vmatpush2.bf16.msra.mxu0 0
        %1428 = vmatprep.subr.bf16.mxu0 0
        %1429 = vmatpush2.bf16.msra.mxu0 0
        %1430 = vmatprep.subr.bf16.mxu0 0
        %1431 = vmatpush2.bf16.msra.mxu0 0
        %1432 = vmatprep.mubr.bf16.mxu0 0
        %1433 = vmatmul.mubr.bf16.gmra.mxu0 %v1395
        %v1434 = vpop.f32.mrf.mxu0
        %v1435 = vadd.f32 0.0, %v1434
        %v1436 = vpop.f32.mrf.mxu0
        %v1437 = vpop.f32.mrf.mxu0
        %v1438 = vpop.f32.mrf.mxu0
        %1439 = vdwg.mxu0
        %1440 = vrot.lane.b32.xlu0 %v1211, 112
        %v1441 = vpop.permute.xlu0 %1440
        %1442 = vrot.lane.b32.xlu0 %v1211, 80
        %v1443 = vpop.permute.xlu0 %1442
        %v1445 = vsel %vm742, %v1441, 0
        %v1448 = vsel %vm742, %v1443, 0
        %1450 = vmatprep.subr.bf16.mxu0 0
        %1451 = vmatpush1.bf16.xpose.msra.mxu0 0
        %1452 = vmatprep.subr.bf16.mxu0 0
        %1453 = vmatpush1.bf16.xpose.msra.mxu0 0
        %1454 = vmatprep.subr.bf16.mxu0 0
        %1455 = vmatpush1.bf16.xpose.msra.mxu0 0
        %1456 = vmatprep.subr.bf16.mxu0 0
        %1457 = vmatpush1.bf16.xpose.msra.mxu0 0
        %1458 = vmatprep.subr.bf16.mxu0 0
        %1459 = vmatpush1.bf16.xpose.msra.mxu0 0
        %1460 = vmatprep.subr.bf16.mxu0 0
        %1461 = vmatpush1.bf16.xpose.msra.mxu0 0
        %1462 = vmatprep.subr.bf16.mxu0 0
        %1463 = vmatpush1.bf16.xpose.msra.mxu0 0
        %1464 = vmatprep.subr.bf16.mxu0 0
        %1465 = vmatpush1.bf16.xpose.msra.mxu0 %v1448
        %1466 = vmatprep.subr.bf16.mxu0 0
        %1467 = vmatpush2.bf16.xpose.msra.mxu0 0
        %1468 = vmatprep.subr.bf16.mxu0 0
        %1469 = vmatpush2.bf16.xpose.msra.mxu0 0
        %1470 = vmatprep.subr.bf16.mxu0 0
        %1471 = vmatpush2.bf16.xpose.msra.mxu0 0
        %1472 = vmatprep.subr.bf16.mxu0 0
        %1473 = vmatpush2.bf16.xpose.msra.mxu0 0
        %1474 = vmatprep.subr.bf16.mxu0 0
        %1475 = vmatpush2.bf16.xpose.msra.mxu0 0
        %1476 = vmatprep.subr.bf16.mxu0 0
        %1477 = vmatpush2.bf16.xpose.msra.mxu0 0
        %1478 = vmatprep.subr.bf16.mxu0 0
        %1479 = vmatpush2.bf16.xpose.msra.mxu0 0
        %1480 = vmatprep.subr.bf16.mxu0 0
        %1481 = vmatpush2.bf16.xpose.msra.mxu0 0
        %1482 = vmatprep.mubr.bf16.mxu0 0
        %1483 = vmatmul.mubr.bf16.gmra.mxu0 %v1445
        %v1484 = vpop.f32.mrf.mxu0
        %v1485 = vadd.f32 0.0, %v1484
        %v1486 = vpop.f32.mrf.mxu0
        %v1487 = vpop.f32.mrf.mxu0
        %v1488 = vpop.f32.mrf.mxu0
        %1489 = vdwg.mxu0
        %v1490 = vmul.f32 %v1485, 0.35355338
        %v1491 = vadd.f32 %v1490, %v1265
        %v1492 = vsel %vm742, %v1491, -inf
        %1493 = vmax.xlane.f32.xlu0 %v1492
        %v1494 = vpop.xlane.xlu0 %1493
        %v1495 = vsub.f32 %v1491, %v1494
        %v1496 = vmul.f32 %v1495, 1.442695
        %v1497 = vpow.pop %v1496
        %v1498 = vsel %vm742, %v1497, 0.0
        %1499 = vadd.xlane.f32.xlu0 %v1498
        %v1500 = vpop.xlane.xlu0 %1499
        %v1501 = vrcp.pop %v1500
        %v1502 = vmul.f32 %v1497, %v1501
        %v1503 = vpack.c.bf16 %v1502, %v1502
        %1504 = vrot.lane.b32.xlu0 %v1211, 48
        %v1505 = vpop.permute.xlu0 %1504
        %v1507 = vsel %vm742, %v1503, 0
        %v1510 = vsel %vm814, %v1505, 0
        %1512 = vmatprep.subr.bf16.mxu0 0
        %1513 = vmatpush1.bf16.msra.mxu0 0
        %1514 = vmatprep.subr.bf16.mxu0 0
        %1515 = vmatpush1.bf16.msra.mxu0 0
        %1516 = vmatprep.subr.bf16.mxu0 0
        %1517 = vmatpush1.bf16.msra.mxu0 0
        %1518 = vmatprep.subr.bf16.mxu0 0
        %1519 = vmatpush1.bf16.msra.mxu0 0
        %1520 = vmatprep.subr.bf16.mxu0 0
        %1521 = vmatpush1.bf16.msra.mxu0 0
        %1522 = vmatprep.subr.bf16.mxu0 0
        %1523 = vmatpush1.bf16.msra.mxu0 0
        %1524 = vmatprep.subr.bf16.mxu0 0
        %1525 = vmatpush1.bf16.msra.mxu0 0
        %1526 = vmatprep.subr.bf16.mxu0 0
        %1527 = vmatpush1.bf16.msra.mxu0 %v1510
        %1528 = vmatprep.subr.bf16.mxu0 0
        %1529 = vmatpush2.bf16.msra.mxu0 0
        %1530 = vmatprep.subr.bf16.mxu0 0
        %1531 = vmatpush2.bf16.msra.mxu0 0
        %1532 = vmatprep.subr.bf16.mxu0 0
        %1533 = vmatpush2.bf16.msra.mxu0 0
        %1534 = vmatprep.subr.bf16.mxu0 0
        %1535 = vmatpush2.bf16.msra.mxu0 0
        %1536 = vmatprep.subr.bf16.mxu0 0
        %1537 = vmatpush2.bf16.msra.mxu0 0
        %1538 = vmatprep.subr.bf16.mxu0 0
        %1539 = vmatpush2.bf16.msra.mxu0 0
        %1540 = vmatprep.subr.bf16.mxu0 0
        %1541 = vmatpush2.bf16.msra.mxu0 0
        %1542 = vmatprep.subr.bf16.mxu0 0
        %1543 = vmatpush2.bf16.msra.mxu0 0
        %1544 = vmatprep.mubr.bf16.mxu0 0
        %1545 = vmatmul.mubr.bf16.gmra.mxu0 %v1507
        %v1546 = vpop.f32.mrf.mxu0
        %v1547 = vadd.f32 0.0, %v1546
        %v1548 = vpop.f32.mrf.mxu0
        %v1549 = vpop.f32.mrf.mxu0
        %v1550 = vpop.f32.mrf.mxu0
        %1551 = vdwg.mxu0
        %1552 = vrot.lane.b32.xlu0 %v1211, 104
        %v1553 = vpop.permute.xlu0 %1552
        %1554 = vrot.lane.b32.xlu0 %v1211, 72
        %v1555 = vpop.permute.xlu0 %1554
        %v1557 = vsel %vm742, %v1553, 0
        %v1560 = vsel %vm742, %v1555, 0
        %1562 = vmatprep.subr.bf16.mxu0 0
        %1563 = vmatpush1.bf16.xpose.msra.mxu0 0
        %1564 = vmatprep.subr.bf16.mxu0 0
        %1565 = vmatpush1.bf16.xpose.msra.mxu0 0
        %1566 = vmatprep.subr.bf16.mxu0 0
        %1567 = vmatpush1.bf16.xpose.msra.mxu0 0
        %1568 = vmatprep.subr.bf16.mxu0 0
        %1569 = vmatpush1.bf16.xpose.msra.mxu0 0
        %1570 = vmatprep.subr.bf16.mxu0 0
        %1571 = vmatpush1.bf16.xpose.msra.mxu0 0
        %1572 = vmatprep.subr.bf16.mxu0 0
        %1573 = vmatpush1.bf16.xpose.msra.mxu0 0
        %1574 = vmatprep.subr.bf16.mxu0 0
        %1575 = vmatpush1.bf16.xpose.msra.mxu0 0
        %1576 = vmatprep.subr.bf16.mxu0 0
        %1577 = vmatpush1.bf16.xpose.msra.mxu0 %v1560
        %1578 = vmatprep.subr.bf16.mxu0 0
        %1579 = vmatpush2.bf16.xpose.msra.mxu0 0
        %1580 = vmatprep.subr.bf16.mxu0 0
        %1581 = vmatpush2.bf16.xpose.msra.mxu0 0
        %1582 = vmatprep.subr.bf16.mxu0 0
        %1583 = vmatpush2.bf16.xpose.msra.mxu0 0
        %1584 = vmatprep.subr.bf16.mxu0 0
        %1585 = vmatpush2.bf16.xpose.msra.mxu0 0
        %1586 = vmatprep.subr.bf16.mxu0 0
        %1587 = vmatpush2.bf16.xpose.msra.mxu0 0
        %1588 = vmatprep.subr.bf16.mxu0 0
        %1589 = vmatpush2.bf16.xpose.msra.mxu0 0
        %1590 = vmatprep.subr.bf16.mxu0 0
        %1591 = vmatpush2.bf16.xpose.msra.mxu0 0
        %1592 = vmatprep.subr.bf16.mxu0 0
        %1593 = vmatpush2.bf16.xpose.msra.mxu0 0
        %1594 = vmatprep.mubr.bf16.mxu0 0
        %1595 = vmatmul.mubr.bf16.gmra.mxu0 %v1557
        %v1596 = vpop.f32.mrf.mxu0
        %v1597 = vadd.f32 0.0, %v1596
        %v1598 = vpop.f32.mrf.mxu0
        %v1599 = vpop.f32.mrf.mxu0
        %v1600 = vpop.f32.mrf.mxu0
        %1601 = vdwg.mxu0
        %v1602 = vmul.f32 %v1597, 0.35355338
        %v1603 = vadd.f32 %v1602, %v1265
        %v1604 = vsel %vm742, %v1603, -inf
        %1605 = vmax.xlane.f32.xlu0 %v1604
        %v1606 = vpop.xlane.xlu0 %1605
        %v1607 = vsub.f32 %v1603, %v1606
        %v1608 = vmul.f32 %v1607, 1.442695
        %v1609 = vpow.pop %v1608
        %v1610 = vsel %vm742, %v1609, 0.0
        %1611 = vadd.xlane.f32.xlu0 %v1610
        %v1612 = vpop.xlane.xlu0 %1611
        %v1613 = vrcp.pop %v1612
        %v1614 = vmul.f32 %v1609, %v1613
        %v1615 = vpack.c.bf16 %v1614, %v1614
        %1616 = vrot.lane.b32.xlu0 %v1211, 40
        %v1617 = vpop.permute.xlu0 %1616
        %v1619 = vsel %vm742, %v1615, 0
        %v1622 = vsel %vm814, %v1617, 0
        %1624 = vmatprep.subr.bf16.mxu0 0
        %1625 = vmatpush1.bf16.msra.mxu0 0
        %1626 = vmatprep.subr.bf16.mxu0 0
        %1627 = vmatpush1.bf16.msra.mxu0 0
        %1628 = vmatprep.subr.bf16.mxu0 0
        %1629 = vmatpush1.bf16.msra.mxu0 0
        %1630 = vmatprep.subr.bf16.mxu0 0
        %1631 = vmatpush1.bf16.msra.mxu0 0
        %1632 = vmatprep.subr.bf16.mxu0 0
        %1633 = vmatpush1.bf16.msra.mxu0 0
        %1634 = vmatprep.subr.bf16.mxu0 0
        %1635 = vmatpush1.bf16.msra.mxu0 0
        %1636 = vmatprep.subr.bf16.mxu0 0
        %1637 = vmatpush1.bf16.msra.mxu0 0
        %1638 = vmatprep.subr.bf16.mxu0 0
        %1639 = vmatpush1.bf16.msra.mxu0 %v1622
        %1640 = vmatprep.subr.bf16.mxu0 0
        %1641 = vmatpush2.bf16.msra.mxu0 0
        %1642 = vmatprep.subr.bf16.mxu0 0
        %1643 = vmatpush2.bf16.msra.mxu0 0
        %1644 = vmatprep.subr.bf16.mxu0 0
        %1645 = vmatpush2.bf16.msra.mxu0 0
        %1646 = vmatprep.subr.bf16.mxu0 0
        %1647 = vmatpush2.bf16.msra.mxu0 0
        %1648 = vmatprep.subr.bf16.mxu0 0
        %1649 = vmatpush2.bf16.msra.mxu0 0
        %1650 = vmatprep.subr.bf16.mxu0 0
        %1651 = vmatpush2.bf16.msra.mxu0 0
        %1652 = vmatprep.subr.bf16.mxu0 0
        %1653 = vmatpush2.bf16.msra.mxu0 0
        %1654 = vmatprep.subr.bf16.mxu0 0
        %1655 = vmatpush2.bf16.msra.mxu0 0
        %1656 = vmatprep.mubr.bf16.mxu0 0
        %1657 = vmatmul.mubr.bf16.gmra.mxu0 %v1619
        %v1658 = vpop.f32.mrf.mxu0
        %v1659 = vadd.f32 0.0, %v1658
        %v1660 = vpop.f32.mrf.mxu0
        %v1661 = vpop.f32.mrf.mxu0
        %v1662 = vpop.f32.mrf.mxu0
        %1663 = vdwg.mxu0
        %1665 = vrot.lane.b32.xlu0 %v1435, 8
        %v1666 = vpop.permute.xlu0 %1665
        %1669 = vrot.lane.b32.xlu0 %v1547, 16
        %v1670 = vpop.permute.xlu0 %1669
        %1673 = vrot.lane.b32.xlu0 %v1659, 24
        %v1674 = vpop.permute.xlu0 %1673
        %v1676 = vsel %vm742, %v1323, %v1666
        %v1677 = vsel %vm1207, %v1676, %v1670
        %v1678 = vsel %vm1209, %v1677, %v1674
        %v1679 = vpack.c.bf16 %v1678, %v1210
        %v1680 = vld [vmem:[#allocation10] sm:$0xf]
        %v1681 = vld [vmem:[#allocation10 + $0x4] sm:$0xf]
        %v1682 = vld [vmem:[#allocation10 + $0x8] sm:$0xf]
        %v1683 = vld [vmem:[#allocation10 + $0xc] sm:$0xf]
        %v1684 = vld [vmem:[#allocation11] sm:$0x1]
        %v1686 = vlaneseq
        %v1687 = vshrl.u32 %v1686, 7
        %v1688 = vsub.s32 0, %v1687
        %v1689 = vrot.slane %v1684, %v1688
        %v1695 = vunpack.c.l.b16 %v1680
        %v1696 = vunpack.c.l.b16 %v1681
        %v1697 = vunpack.c.l.b16 %v1682
        %v1698 = vunpack.c.l.b16 %v1683
        %v1699 = vpack.c.b16 %v1696, %v1695
        %v1700 = vpack.c.b16 %v1698, %v1697
        %v1704 = vsel %vm611, %v1679, 0
        %1706 = vmatprep.subr.bf16.mxu0 0
        %1707 = vmatpush1.bf16.msra.mxu0 0
        %1708 = vmatprep.subr.bf16.mxu0 0
        %1709 = vmatpush1.bf16.msra.mxu0 0
        %1710 = vmatprep.subr.bf16.mxu0 0
        %1711 = vmatpush1.bf16.msra.mxu0 0
        %1712 = vmatprep.subr.bf16.mxu0 0
        %1713 = vmatpush1.bf16.msra.mxu0 0
        %1714 = vmatprep.subr.bf16.mxu0 0
        %1715 = vmatpush1.bf16.msra.mxu0 0
        %1716 = vmatprep.subr.bf16.mxu0 0
        %1717 = vmatpush1.bf16.msra.mxu0 0
        %1718 = vmatprep.subr.bf16.mxu0 0
        %1719 = vmatpush1.bf16.msra.mxu0 %v1700
        %1720 = vmatprep.subr.bf16.mxu0 0
        %1721 = vmatpush1.bf16.msra.mxu0 %v1699
        %1722 = vmatprep.subr.bf16.mxu0 0
        %1723 = vmatpush2.bf16.msra.mxu0 0
        %1724 = vmatprep.subr.bf16.mxu0 0
        %1725 = vmatpush2.bf16.msra.mxu0 0
        %1726 = vmatprep.subr.bf16.mxu0 0
        %1727 = vmatpush2.bf16.msra.mxu0 0
        %1728 = vmatprep.subr.bf16.mxu0 0
        %1729 = vmatpush2.bf16.msra.mxu0 0
        %1730 = vmatprep.subr.bf16.mxu0 0
        %1731 = vmatpush2.bf16.msra.mxu0 0
        %1732 = vmatprep.subr.bf16.mxu0 0
        %1733 = vmatpush2.bf16.msra.mxu0 0
        %1734 = vmatprep.subr.bf16.mxu0 0
        %1735 = vmatpush2.bf16.msra.mxu0 0
        %1736 = vmatprep.subr.bf16.mxu0 0
        %1737 = vmatpush2.bf16.msra.mxu0 0
        %1738 = vmatprep.mubr.bf16.mxu0 0
        %1739 = vmatmul.mubr.bf16.gmra.mxu0 %v1704
        %v1740 = vpop.f32.mrf.mxu0
        %v1741 = vadd.f32 %v1689, %v1740
        %v1742 = vpop.f32.mrf.mxu0
        %v1743 = vpop.f32.mrf.mxu0
        %v1744 = vadd.f32 %v1689, %v1743
        %v1745 = vpop.f32.mrf.mxu0
        %1746 = vdwg.mxu0
        %v1747 = vadd.f32 %v601, %v1741
        %v1748 = vadd.f32 %v602, %v1744
        %v1749 = vld [vmem:[#allocation13] sm:$0x1]
        %v1750 = vld [vmem:[#allocation14] sm:$0x1]
        %v1751 = vsel %vm611, %v1747, 0.0
        %1752 = vadd.xlane.f32.xlu0 %v1751
        %v1753 = vpop.xlane.xlu0 %1752
        %v1754 = vsel %vm611, %v1748, 0.0
        %1755 = vadd.xlane.f32.xlu0 %v1754
        %v1756 = vpop.xlane.xlu0 %1755
        %v1757 = vmul.f32 %v1753, %v618
        %v1758 = vmul.f32 %v1756, %v618
        %v1759 = vsub.f32 %v1747, %v1757
        %v1760 = vsub.f32 %v1748, %v1758
        %v1761 = vmul.f32 %v1759, %v1759
        %v1762 = vmul.f32 %v1760, %v1760
        %v1763 = vsel %vm611, %v1761, 0.0
        %1764 = vadd.xlane.f32.xlu0 %v1763
        %v1765 = vpop.xlane.xlu0 %1764
        %v1766 = vsel %vm611, %v1762, 0.0
        %1767 = vadd.xlane.f32.xlu0 %v1766
        %v1768 = vpop.xlane.xlu0 %1767
        %v1769 = vmul.f32 %v1765, %v631
        %v1770 = vmul.f32 %v1768, %v631
        %v1771 = vrsqrt.pop %v1769
        %v1772 = vmul.f32 %v1769, %v1771
        %vm1773 = vcmp.eq.f32.partialorder %v1769, inf
        %v1774 = vsel %vm1773, %v1769, %v1772
        %vm1775 = vcmp.eq.f32.partialorder %v1769, 0.0
        %v1776 = vand.u32 %v1769, 2147483648
        %v1777 = vsel %vm1775, %v1776, %v1774
        %v1778 = vrsqrt.pop %v1770
        %v1779 = vmul.f32 %v1770, %v1778
        %vm1780 = vcmp.eq.f32.partialorder %v1770, inf
        %v1781 = vsel %vm1780, %v1770, %v1779
        %vm1782 = vcmp.eq.f32.partialorder %v1770, 0.0
        %v1783 = vand.u32 %v1770, 2147483648
        %v1784 = vsel %vm1782, %v1783, %v1781
        %v1786 = vlaneseq
        %v1787 = vshrl.u32 %v1786, 7
        %v1788 = vsub.s32 0, %v1787
        %v1789 = vrot.slane %v1749, %v1788
        %v1791 = vmul.f32 %v1789, %v1759
        %v1792 = vmul.f32 %v1789, %v1760
        %v1793 = vadd.f32 %v1777, 1e-06
        %v1794 = vadd.f32 %v1784, 1e-06
        %v1795 = vrcp.pop %v1793
        %v1796 = vmul.f32 %v1791, %v1795
        %v1797 = vrcp.pop %v1794
        %v1798 = vmul.f32 %v1792, %v1797
        %v1800 = vlaneseq
        %v1801 = vshrl.u32 %v1800, 7
        %v1802 = vsub.s32 0, %v1801
        %v1803 = vrot.slane %v1750, %v1802
        %v1805 = vadd.f32 %v1796, %v1803
        %v1806 = vadd.f32 %v1798, %v1803
        %v1807 = vpack.c.bf16 %v1806, %v1805
        %v1808 = vld [vmem:[%s10] sm:$0xf]
        %v1809 = vld [vmem:[%s10 + $0x4] sm:$0xf]
        %v1810 = vld [vmem:[%s10 + $0x8] sm:$0xf]
        %v1811 = vld [vmem:[%s10 + $0xc] sm:$0xf]
        %v1812 = vld [vmem:[%s11] sm:$0x1]
        %v1814 = vlaneseq
        %v1815 = vshrl.u32 %v1814, 7
        %v1816 = vsub.s32 0, %v1815
        %v1817 = vrot.slane %v1812, %v1816
        %v1823 = vunpack.c.l.b16 %v1808
        %v1824 = vunpack.c.l.b16 %v1809
        %v1825 = vunpack.c.l.b16 %v1810
        %v1826 = vunpack.c.l.b16 %v1811
        %v1827 = vpack.c.b16 %v1824, %v1823
        %v1828 = vpack.c.b16 %v1826, %v1825
        %v1832 = vsel %vm611, %v1807, 0
        %1834 = vmatprep.subr.bf16.mxu0 0
        %1835 = vmatpush1.bf16.msra.mxu0 0
        %1836 = vmatprep.subr.bf16.mxu0 0
        %1837 = vmatpush1.bf16.msra.mxu0 0
        %1838 = vmatprep.subr.bf16.mxu0 0
        %1839 = vmatpush1.bf16.msra.mxu0 0
        %1840 = vmatprep.subr.bf16.mxu0 0
        %1841 = vmatpush1.bf16.msra.mxu0 0
        %1842 = vmatprep.subr.bf16.mxu0 0
        %1843 = vmatpush1.bf16.msra.mxu0 0
        %1844 = vmatprep.subr.bf16.mxu0 0
        %1845 = vmatpush1.bf16.msra.mxu0 0
        %1846 = vmatprep.subr.bf16.mxu0 0
        %1847 = vmatpush1.bf16.msra.mxu0 %v1828
        %1848 = vmatprep.subr.bf16.mxu0 0
        %1849 = vmatpush1.bf16.msra.mxu0 %v1827
        %1850 = vmatprep.subr.bf16.mxu0 0
        %1851 = vmatpush2.bf16.msra.mxu0 0
        %1852 = vmatprep.subr.bf16.mxu0 0
        %1853 = vmatpush2.bf16.msra.mxu0 0
        %1854 = vmatprep.subr.bf16.mxu0 0
        %1855 = vmatpush2.bf16.msra.mxu0 0
        %1856 = vmatprep.subr.bf16.mxu0 0
        %1857 = vmatpush2.bf16.msra.mxu0 0
        %1858 = vmatprep.subr.bf16.mxu0 0
        %1859 = vmatpush2.bf16.msra.mxu0 0
        %1860 = vmatprep.subr.bf16.mxu0 0
        %1861 = vmatpush2.bf16.msra.mxu0 0
        %1862 = vmatprep.subr.bf16.mxu0 0
        %1863 = vmatpush2.bf16.msra.mxu0 0
        %1864 = vmatprep.subr.bf16.mxu0 0
        %1865 = vmatpush2.bf16.msra.mxu0 0
        %1866 = vmatprep.mubr.bf16.mxu0 0
        %1867 = vmatmul.mubr.bf16.gmra.mxu0 %v1832
        %v1868 = vpop.f32.mrf.mxu0
        %v1869 = vadd.f32 %v1817, %v1868
        %v1870 = vpop.f32.mrf.mxu0
        %v1871 = vpop.f32.mrf.mxu0
        %v1872 = vadd.f32 %v1817, %v1871
        %v1873 = vpop.f32.mrf.mxu0
        %1874 = vdwg.mxu0
        %v1875 = vmax.f32 %v1869, 0.0
        %v1876 = vmax.f32 %v1872, 0.0
        %v1877 = vpack.c.bf16 %v1876, %v1875
        %v1878 = vld [vmem:[%s12] sm:$0xf]
        %v1879 = vld [vmem:[%s12 + $0x4] sm:$0xf]
        %v1880 = vld [vmem:[%s12 + $0x8] sm:$0xf]
        %v1881 = vld [vmem:[%s12 + $0xc] sm:$0xf]
        %v1882 = vld [vmem:[%s12 + $0x10] sm:$0xf]
        %v1883 = vld [vmem:[%s12 + $0x14] sm:$0xf]
        %v1884 = vld [vmem:[%s12 + $0x18] sm:$0xf]
        %v1885 = vld [vmem:[%s12 + $0x1c] sm:$0xf]
        %v1886 = vld [vmem:[%s13] sm:$0x1]
        %v1888 = vlaneseq
        %v1889 = vshrl.u32 %v1888, 7
        %v1890 = vsub.s32 0, %v1889
        %v1891 = vrot.slane %v1886, %v1890
        %v1901 = vunpack.c.l.b16 %v1878
        %v1902 = vunpack.c.l.b16 %v1879
        %v1903 = vunpack.c.l.b16 %v1880
        %v1904 = vunpack.c.l.b16 %v1881
        %v1905 = vunpack.c.l.b16 %v1882
        %v1906 = vunpack.c.l.b16 %v1883
        %v1907 = vunpack.c.l.b16 %v1884
        %v1908 = vunpack.c.l.b16 %v1885
        %v1909 = vpack.c.b16 %v1902, %v1901
        %v1910 = vpack.c.b16 %v1904, %v1903
        %v1911 = vpack.c.b16 %v1906, %v1905
        %v1912 = vpack.c.b16 %v1908, %v1907
        %vm1917 = vcmask 523264
        %v1919 = vsel %vm1917, %v1877, 0
        %1921 = vmatprep.subr.bf16.mxu0 0
        %1922 = vmatpush1.bf16.msra.mxu0 0
        %1923 = vmatprep.subr.bf16.mxu0 0
        %1924 = vmatpush1.bf16.msra.mxu0 0
        %1925 = vmatprep.subr.bf16.mxu0 0
        %1926 = vmatpush1.bf16.msra.mxu0 0
        %1927 = vmatprep.subr.bf16.mxu0 0
        %1928 = vmatpush1.bf16.msra.mxu0 0
        %1929 = vmatprep.subr.bf16.mxu0 0
        %1930 = vmatpush1.bf16.msra.mxu0 %v1912
        %1931 = vmatprep.subr.bf16.mxu0 0
        %1932 = vmatpush1.bf16.msra.mxu0 %v1911
        %1933 = vmatprep.subr.bf16.mxu0 0
        %1934 = vmatpush1.bf16.msra.mxu0 %v1910
        %1935 = vmatprep.subr.bf16.mxu0 0
        %1936 = vmatpush1.bf16.msra.mxu0 %v1909
        %1937 = vmatprep.subr.bf16.mxu0 0
        %1938 = vmatpush2.bf16.msra.mxu0 0
        %1939 = vmatprep.subr.bf16.mxu0 0
        %1940 = vmatpush2.bf16.msra.mxu0 0
        %1941 = vmatprep.subr.bf16.mxu0 0
        %1942 = vmatpush2.bf16.msra.mxu0 0
        %1943 = vmatprep.subr.bf16.mxu0 0
        %1944 = vmatpush2.bf16.msra.mxu0 0
        %1945 = vmatprep.subr.bf16.mxu0 0
        %1946 = vmatpush2.bf16.msra.mxu0 0
        %1947 = vmatprep.subr.bf16.mxu0 0
        %1948 = vmatpush2.bf16.msra.mxu0 0
        %1949 = vmatprep.subr.bf16.mxu0 0
        %1950 = vmatpush2.bf16.msra.mxu0 0
        %1951 = vmatprep.subr.bf16.mxu0 0
        %1952 = vmatpush2.bf16.msra.mxu0 0
        %1953 = vmatprep.mubr.bf16.mxu0 0
        %1954 = vmatmul.mubr.bf16.gmra.mxu0 %v1919
        %v1955 = vpop.f32.mrf.mxu0
        %v1956 = vadd.f32 %v1891, %v1955
        %v1957 = vpop.f32.mrf.mxu0
        %v1958 = vpop.f32.mrf.mxu0
        %v1959 = vadd.f32 %v1891, %v1958
        %v1960 = vpop.f32.mrf.mxu0
        %1961 = vdwg.mxu0
        %v1962 = vadd.f32 %v1747, %v1956
        %v1963 = vadd.f32 %v1748, %v1959
        %1964 = vst.msk [vmem:[%s591] sm:$0xff] %vm611, %v1962
        %1965 = vst.msk [vmem:[%s591 + $0x8] sm:$0xff] %vm611, %v1963
        %s1966 = sand.u32 %s347, 1
        %s1967 = scalar_lea.sflag [#allocation4], %s1966
        %s1968 = sand.u32 %s347, 1
        %s1969 = smul.addr %s1968, 16
        %s1970 = scalar_lea.vmem [#allocation16], %s1969
        // Predicated region
        $region109: #{tpu_custom_call.1} parent=75 // pred_check
          %p1971 = pneg %p357
        $region110: #{tpu_custom_call.1} parent=75 // pred_check_branch
          %1973 = sbr.rel (%p1971) target = $region112
        $region111: #{tpu_custom_call.1} parent=75 // pred_region
          %s1974 = smul.u32 2, %s35
          %s1976 = ssub.s32 256, 256
          %1977 = vsyncadd %s1967, %s1976
          %s1978 = smul.addr %s1974, 128
          %s1979 = scalar_lea.hbm %s14, %s1978
          %s1980 = sshll.u32 %s1970, 4
          %s1981 = int_to_ptr.vmem [resolvable:$true] %s1980
          %1986 = dma.vmem_to_hbm [thread:$0]  %s1981, 256, %s1979, %s1967, 128, 128, 8
        $region112: #{tpu_custom_call.1} parent=75 // pred_fallthru
          _
      $region76: #{tpu_custom_call.1} parent=5 // pred_fallthru
        _
      %p1987 = scmp.le.s32.totalorder 2, %s30
      // Predicated region
      $region113: #{tpu_custom_call.1} parent=5 // pred_check
        %p1988 = pneg %p1987
      $region114: #{tpu_custom_call.1} parent=5 // pred_check_branch
        %1990 = sbr.rel (%p1988) target = $region116
      $region115: #{tpu_custom_call.1} parent=5 // pred_region
        %s1991 = ssub.s32 %s30, 2
        // Predicated region
        $region117: #{tpu_custom_call.1} parent=115 // pred_check
          %p1992 = pneg %p363
        $region118: #{tpu_custom_call.1} parent=115 // pred_check_branch
          %1994 = sbr.rel (%p1992) target = $region120
        $region119: #{tpu_custom_call.1} parent=115 // pred_region
          %s1995 = sand.u32 %s348, 1
          %s1996 = scalar_lea.sflag [#allocation4], %s1995
          %s1997 = sand.u32 %s348, 1
          %s1998 = smul.addr %s1997, 16
          %s1999 = scalar_lea.vmem [#allocation16], %s1998
          %2000 = dma.done %s1996, 256
        $region120: #{tpu_custom_call.1} parent=115 // pred_fallthru
          _
      $region116: #{tpu_custom_call.1} parent=5 // pred_fallthru
        _
    $region6: #{tpu_custom_call.1} parent=1 // loop_footer
      %s34 = sadd.s32 1, %s30
    $region7: #{tpu_custom_call.1} parent=1 // loop_footer_branch
      %29 = sbr.rel target = $region3
    $region8: #{tpu_custom_call.1} parent=1 // loop_exit
      _
    %2001 = vsyncpa [#allocation3], 1
    %s2002 = scalar_lea.sflag [#allocation3], 1
    %2003 = vsyncpa %s2002, 1
    %2004 = vsyncpa [#allocation6], 1
    %2005 = vsyncpa [#allocation9], 1
    %2006 = vsyncpa [#allocation12], 1
    %2007 = vsyncpa [#allocation15], 1
    %2008 = vsyncpa [#allocation4], 1
    %s2009 = scalar_lea.sflag [#allocation4], 1
    %2010 = vsyncpa %s2009, 1

</llo_original>
